<compile_context>
chip_gen: v6e
topology: v6e:2x2x1
jax: 0.10.0
libtpu: 0.0.40
codegen_flags: <defaults>
</compile_context>

<pallas_src>
import functools

import jax
import jax.numpy as jnp
from jax.experimental import pallas as pl
from jax.experimental.pallas import tpu as pltpu

LN_EPS = 1e-5  # torch.nn.LayerNorm default


def _layernorm(x, w, b):
    mu = jnp.mean(x, axis=-1, keepdims=True)
    var = jnp.mean((x - mu) ** 2, axis=-1, keepdims=True)
    return (x - mu) * jax.lax.rsqrt(var + LN_EPS) * w + b


# ---------------------------------------------------------------------------
# Fused forward kernel.
#   grid = (batch, depth); batch is "parallel", depth is a sequential carry.
#   x_scr (VMEM scratch) holds the (t, e) activation of the current batch row
#   across all depth steps.
# ---------------------------------------------------------------------------
def fused_kernel(x_ref, pos_ref, wqkv_ref, bu_ref,
                 ln1w_ref, ln1b_ref, w1_ref, b1_ref, w2_ref, b2_ref,
                 ln2w_ref, ln2b_ref, wab_ref, bab_ref,
                 out_ref, x_scr):
    d = pl.program_id(1)
    t, e = x_scr.shape
    he = wqkv_ref.shape[-1] // 3
    h = he // e

    # depth step 0: bring this batch row into VMEM and add the position embedding.
    @pl.when(d == 0)
    def _():
        x_scr[...] = x_ref[0] + pos_ref[...]

    x = x_scr[...]                                                       # (t, e) f32

    # ---- self attention: all heads batched --------------------------------------
    # One lane-dense projection producing [Q | K | V'] for every head, where
    #   Q, K already carry the e**-0.25 scale (folded into the weights) and
    #   V'_h = x @ (Wv_h @ Wu_h) has the unify-heads Linear pre-folded in.
    qkv = jnp.dot(x, wqkv_ref[0], preferred_element_type=jnp.float32)    # (t, 3*h*e)
    q3 = jnp.stack([qkv[:, i * e:(i + 1) * e] for i in range(h)], axis=0)
    k3 = jnp.stack([qkv[:, he + i * e:he + (i + 1) * e] for i in range(h)], axis=0)
    v3 = jnp.stack([qkv[:, 2 * he + i * e:2 * he + (i + 1) * e] for i in range(h)],
                   axis=0)                                               # (h, t, e)

    # scores (h, t, t) batched over heads; softmax over keys.
    scores = jnp.einsum('htd,hsd->hts', q3, k3,
                        preferred_element_type=jnp.float32)
    m = jnp.max(scores, axis=-1, keepdims=True)
    p = jnp.exp(scores - m)
    p = p * pl.reciprocal(jnp.sum(p, axis=-1, keepdims=True), approx=True)

    # P @ V' per head; unify-heads is already folded into V', so just sum heads.
    ctx = jnp.einsum('hts,hsd->htd', p, v3,
                     preferred_element_type=jnp.float32)                 # (h, t, e)
    attended = jnp.sum(ctx, axis=0) + bu_ref[0]                          # (t, e)

    # ---- residual + LayerNorm 1 --------------------------------------------------
    x1 = _layernorm(attended + x, ln1w_ref[0], ln1b_ref[0])

    # ---- feed forward: Linear(e,4e) -> ReLU -> Linear(4e,e) ----------------------
    hid = jnp.dot(x1, w1_ref[0], preferred_element_type=jnp.float32) + b1_ref[0]
    hid = jnp.maximum(hid, 0.0)
    ff = jnp.dot(hid, w2_ref[0], preferred_element_type=jnp.float32) + b2_ref[0]

    # ---- residual + LayerNorm 2 --------------------------------------------------
    x2 = _layernorm(ff + x1, ln2w_ref[0], ln2b_ref[0])
    x_scr[...] = x2          # carry to next depth step (dropout p=0.0 == identity)

    # ---- epilogue at the last block: max-pool over t + merged regression heads ---
    @pl.when(d == pl.num_programs(1) - 1)
    def _():
        pooled = jnp.max(x2, axis=0, keepdims=True)                      # (1, e)
        out_ref[0] = (jnp.dot(pooled, wab_ref[...],
                              preferred_element_type=jnp.float32)
                      + bab_ref[...]).astype(out_ref.dtype)


# ---------------------------------------------------------------------------
# BlockSpec helpers
# ---------------------------------------------------------------------------
def _depth_spec(shape):
    """Weight stacked over depth: block is one depth slice, indexed by grid axis 1."""
    nd = len(shape)
    return pl.BlockSpec((1,) + tuple(shape[1:]),
                        lambda i, d, _nd=nd: (d,) + (0,) * (_nd - 1))


def _const_spec(shape):
    """Full array as one block; fixed block index => DMA'd only once."""
    nd = len(shape)
    return pl.BlockSpec(tuple(shape), lambda i, d, _nd=nd: (0,) * _nd)


# ---------------------------------------------------------------------------
# Full forward: single fused pallas_call + trivial glue (slice / squeeze).
# `params` here is the packed, kernel-ready parameter dict.
# ---------------------------------------------------------------------------
def rtransformer_forward(x, params):
    b, t, e = x.shape
    depth = params['wqkv'].shape[0]
    nc2 = params['wab'].shape[-1]
    nc = nc2 // 2
    pos = params['pos_emb'][:t]                      # (t, e)

    names = ('wqkv', 'bu', 'ln1w', 'ln1b',
             'w1', 'b1', 'w2', 'b2', 'ln2w', 'ln2b')
    block_w = [params[n] for n in names]

    in_specs = ([pl.BlockSpec((1, t, e), lambda i, d: (i, 0, 0)),   # x
                 _const_spec(pos.shape)]                            # pos embedding
                + [_depth_spec(w.shape) for w in block_w]
                + [_const_spec(params['wab'].shape),
                   _const_spec(params['bab'].shape)])

    out = pl.pallas_call(
        fused_kernel,
        out_shape=jax.ShapeDtypeStruct((b, 1, nc2), jnp.float32),
        grid_spec=pltpu.PrefetchScalarGridSpec(
            num_scalar_prefetch=0,
            grid=(b, depth),
            in_specs=in_specs,
            out_specs=pl.BlockSpec((1, 1, nc2), lambda i, d: (i, 0, 0)),
            scratch_shapes=[pltpu.VMEM((t, e), jnp.float32)]),
        compiler_params=pltpu.CompilerParams(
            dimension_semantics=("parallel", "arbitrary")),
    )(x, pos, *block_w, params['wab'], params['bab'])

    out = out[:, 0, :]
    return jnp.squeeze(out[:, :nc]), jnp.squeeze(out[:, nc:])


# ---------------------------------------------------------------------------
# Parameter construction (deterministic, PyTorch-like fan-in scales), in the
# "torch-like" layout used by the pure-JAX reference.
# ---------------------------------------------------------------------------
def init_params(key, emb, heads, depth, seq_length, num_classes):
    he = heads * emb

    def u(k, shape, fan_in):
        bound = 1.0 / (fan_in ** 0.5)
        return jax.random.uniform(k, shape, jnp.float32, -bound, bound)

    keys = iter(jax.random.split(key, 9 * depth + 5))
    p = {n: [] for n in ('wq', 'wk', 'wv', 'wu', 'bu', 'w1', 'b1', 'w2', 'b2',
                         'ln1w', 'ln1b', 'ln2w', 'ln2b')}
    for _ in range(depth):
        p['wq'].append(u(next(keys), (emb, he), emb))        # W_q^T (x @ w form)
        p['wk'].append(u(next(keys), (emb, he), emb))
        p['wv'].append(u(next(keys), (emb, he), emb))
        p['wu'].append(u(next(keys), (he, emb), he))         # unify-heads W^T
        p['bu'].append(u(next(keys), (emb,), he))
        p['w1'].append(u(next(keys), (emb, 4 * emb), emb))
        p['b1'].append(u(next(keys), (4 * emb,), emb))
        p['w2'].append(u(next(keys), (4 * emb, emb), 4 * emb))
        p['b2'].append(u(next(keys), (emb,), 4 * emb))
        p['ln1w'].append(jnp.ones((emb,), jnp.float32))
        p['ln1b'].append(jnp.zeros((emb,), jnp.float32))
        p['ln2w'].append(jnp.ones((emb,), jnp.float32))
        p['ln2b'].append(jnp.zeros((emb,), jnp.float32))

    params = {n: jnp.stack(v, axis=0) for n, v in p.items()}
    params['wa'] = u(next(keys), (emb, num_classes), emb)     # toprobs
    params['ba'] = u(next(keys), (num_classes,), emb)
    params['wb'] = u(next(keys), (emb, num_classes), emb)     # toprobs_b
    params['bb'] = u(next(keys), (num_classes,), emb)
    params['pos_emb'] = jax.random.normal(next(keys), (seq_length, emb), jnp.float32)
    return params


# ---------------------------------------------------------------------------
# Pack torch-like params into the kernel-ready layout (done once, outside jit):
#   * e**-0.25 q/k scale folded into Wq / Wk,
#   * unify-heads Linear folded into the V projection (Wv_h @ Wu_h),
#   * Wq | Wk | Wv' concatenated into a single (e, 3*h*e) matrix per block,
#   * the two regression heads merged into one (e, 2*num_classes) matrix,
#   * biases / LN params reshaped to (depth, 1, dim) for clean 2-D broadcasting.
# ---------------------------------------------------------------------------
def pack_kernel_params(params):
    depth, e, he = params['wq'].shape
    h = he // e
    qk_scale = float(e) ** -0.25

    wv_r = params['wv'].reshape(depth, e, h, e)              # per-head Wv columns
    wu_r = params['wu'].reshape(depth, h, e, e)              # per-head Wu rows
    wvu = jnp.einsum('dahb,dhbc->dahc', wv_r, wu_r).reshape(depth, e, he)

    kp = {
        'wqkv': jnp.concatenate([params['wq'] * qk_scale,
                                 params['wk'] * qk_scale,
                                 wvu], axis=-1),             # (depth, e, 3*h*e)
        'bu': params['bu'][:, None, :],
        'ln1w': params['ln1w'][:, None, :],
        'ln1b': params['ln1b'][:, None, :],
        'w1': params['w1'],
        'b1': params['b1'][:, None, :],
        'w2': params['w2'],
        'b2': params['b2'][:, None, :],
        'ln2w': params['ln2w'][:, None, :],
        'ln2b': params['ln2b'][:, None, :],
        'wab': jnp.concatenate([params['wa'], params['wb']], axis=-1),   # (e, 2*nc)
        'bab': jnp.concatenate([params['ba'], params['bb']], axis=-1)[None, :],
        'pos_emb': params['pos_emb'],
    }
    return kp


# ---------------------------------------------------------------------------
# Pure-JAX reference (un-fused, PyTorch-order computation) for correctness.
# ---------------------------------------------------------------------------
def rtransformer_reference(x, params):
    b, t, e = x.shape
    depth, _, he = params['wq'].shape
    h = he // e
    s = float(e) ** -0.25
    x = x + params['pos_emb'][:t][None]
    for d in range(depth):
        q = (x @ params['wq'][d]).reshape(b, t, h, e) * s
        k = (x @ params['wk'][d]).reshape(b, t, h, e) * s
        v = (x @ params['wv'][d]).reshape(b, t, h, e)
        dot = jnp.einsum('bthe,bshe->bhts', q, k)
        p = jax.nn.softmax(dot, axis=-1)
        ctx = jnp.einsum('bhts,bshe->bthe', p, v).reshape(b, t, he)
        attended = ctx @ params['wu'][d] + params['bu'][d]
        x1 = _layernorm(attended + x, params['ln1w'][d], params['ln1b'][d])
        hid = jnp.maximum(x1 @ params['w1'][d] + params['b1'][d], 0.0)
        ff = hid @ params['w2'][d] + params['b2'][d]
        x = _layernorm(ff + x1, params['ln2w'][d], params['ln2b'][d])
    pooled = jnp.max(x, axis=1)
    x_a = pooled @ params['wa'] + params['ba']
    x_b = pooled @ params['wb'] + params['bb']
    return jnp.squeeze(x_a), jnp.squeeze(x_b)


if __name__ == "__main__":
    # small shapes consistent with the module's forward: x is (b, t, emb) float
    b, t, emb = 2, 8, 32
    heads, depth, seq_length, num_classes = 4, 2, 8, 1

    key = jax.random.PRNGKey(0)
    kx, kparam = jax.random.split(key)
    x = jax.random.normal(kx, (b, t, emb), jnp.float32)
    params = init_params(kparam, emb, heads, depth, seq_length, num_classes)
    kernel_params = pack_kernel_params(params)

    fwd = jax.jit(functools.partial(rtransformer_forward, params=kernel_params))
    x_a, x_b = fwd(x)
    jax.block_until_ready((x_a, x_b))
    assert x_a.shape == (b,) and x_b.shape == (b,)

    # numerical sanity check vs pure-JAX reference (approx reciprocal + folded
    # Wv@Wu / e**-0.25 reorderings are far below this tolerance).
    r_a, r_b = rtransformer_reference(x, params)
    assert jnp.allclose(x_a, r_a, rtol=5e-2, atol=5e-2), (x_a, r_a)
    assert jnp.allclose(x_b, r_b, rtol=5e-2, atol=5e-2), (x_b, r_b)
    print("KERNEL_OK")
</pallas_src>

<mosaic_0001>
module attributes {stable_mosaic.version = 11 : i64} {
  func.func @fused_kernel(%arg0: i32, %arg1: i32, %arg2: memref<1x8x32xf32, #tpu.memory_space<vmem>>, %arg3: memref<8x32xf32, #tpu.memory_space<vmem>>, %arg4: memref<1x32x384xf32, #tpu.memory_space<vmem>>, %arg5: memref<1x1x32xf32, #tpu.memory_space<vmem>>, %arg6: memref<1x1x32xf32, #tpu.memory_space<vmem>>, %arg7: memref<1x1x32xf32, #tpu.memory_space<vmem>>, %arg8: memref<1x32x128xf32, #tpu.memory_space<vmem>>, %arg9: memref<1x1x128xf32, #tpu.memory_space<vmem>>, %arg10: memref<1x128x32xf32, #tpu.memory_space<vmem>>, %arg11: memref<1x1x32xf32, #tpu.memory_space<vmem>>, %arg12: memref<1x1x32xf32, #tpu.memory_space<vmem>>, %arg13: memref<1x1x32xf32, #tpu.memory_space<vmem>>, %arg14: memref<32x2xf32, #tpu.memory_space<vmem>>, %arg15: memref<1x2xf32, #tpu.memory_space<vmem>>, %arg16: memref<1x1x2xf32, #tpu.memory_space<vmem>>, %arg17: memref<8x32xf32, #tpu.memory_space<vmem>>) attributes {dimension_semantics = [#tpu.dimension_semantics<parallel>, #tpu.dimension_semantics<arbitrary>], iteration_bounds = array<i64: 2, 2>, scalar_prefetch = 0 : i64, scratch_operands = 1 : i64, tpu.core_type = #tpu.core_type<tc>, window_params = [{transform_indices = @transform_0, window_bounds = array<i64: 1, 8, 32>}, {pipeline_mode = #tpu.pipeline_mode<synchronous>, transform_indices = @transform_1, window_bounds = array<i64: 8, 32>}, {transform_indices = @transform_2, window_bounds = array<i64: 1, 32, 384>}, {transform_indices = @transform_3, window_bounds = array<i64: 1, 1, 32>}, {transform_indices = @transform_4, window_bounds = array<i64: 1, 1, 32>}, {transform_indices = @transform_5, window_bounds = array<i64: 1, 1, 32>}, {transform_indices = @transform_6, window_bounds = array<i64: 1, 32, 128>}, {transform_indices = @transform_7, window_bounds = array<i64: 1, 1, 128>}, {transform_indices = @transform_8, window_bounds = array<i64: 1, 128, 32>}, {transform_indices = @transform_9, window_bounds = array<i64: 1, 1, 32>}, {transform_indices = @transform_10, window_bounds = array<i64: 1, 1, 32>}, {transform_indices = @transform_11, window_bounds = array<i64: 1, 1, 32>}, {pipeline_mode = #tpu.pipeline_mode<synchronous>, transform_indices = @transform_12, window_bounds = array<i64: 32, 2>}, {pipeline_mode = #tpu.pipeline_mode<synchronous>, transform_indices = @transform_13, window_bounds = array<i64: 1, 2>}, {transform_indices = @transform_14, window_bounds = array<i64: 1, 1, 2>}]} {
    %c0_i32 = arith.constant 0 : i32
    %0 = arith.cmpi eq, %arg1, %c0_i32 : i32
    %1 = arith.extui %0 : i1 to i32
    %c0_i32_0 = arith.constant 0 : i32
    %2 = arith.cmpi ne, %1, %c0_i32_0 : i32
    scf.if %2 {
      %c0_53 = arith.constant 0 : index
      %c0_54 = arith.constant 0 : index
      %c0_55 = arith.constant 0 : index
      %125 = vector.load %arg2[%c0_53, %c0_54, %c0_55] : memref<1x8x32xf32, #tpu.memory_space<vmem>>, vector<1x8x32xf32>
      %126 = vector.shape_cast %125 : vector<1x8x32xf32> to vector<8x32xf32>
      %c0_56 = arith.constant 0 : index
      %c0_57 = arith.constant 0 : index
      %127 = vector.load %arg3[%c0_56, %c0_57] : memref<8x32xf32, #tpu.memory_space<vmem>>, vector<8x32xf32>
      %128 = arith.addf %126, %127 : vector<8x32xf32>
      %c0_58 = arith.constant 0 : index
      %c0_59 = arith.constant 0 : index
      %129 = vector.load %arg17[%c0_58, %c0_59] : memref<8x32xf32, #tpu.memory_space<vmem>>, vector<8x32xf32>
      tpu.vector_store %arg17[%c0_58, %c0_59], %128 {strides = array<i32>} : memref<8x32xf32, #tpu.memory_space<vmem>>, vector<8x32xf32>,
    } else {
    }
    %c0 = arith.constant 0 : index
    %c0_1 = arith.constant 0 : index
    %3 = vector.load %arg17[%c0, %c0_1] : memref<8x32xf32, #tpu.memory_space<vmem>>, vector<8x32xf32>
    %c0_2 = arith.constant 0 : index
    %c0_3 = arith.constant 0 : index
    %c0_4 = arith.constant 0 : index
    %4 = vector.load %arg4[%c0_2, %c0_3, %c0_4] : memref<1x32x384xf32, #tpu.memory_space<vmem>>, vector<1x32x384xf32>
    %5 = vector.shape_cast %4 : vector<1x32x384xf32> to vector<32x384xf32>
    %cst = arith.constant dense<0.000000e+00> : vector<8x384xf32>
    %6 = tpu.matmul %3, %5, %cst {dimension_numbers = #tpu.dot_dimension_numbers<[1], [0], [0], [1], [0, 0, 1, 1], [], []>} : vector<8x32xf32>, vector<32x384xf32>, vector<8x384xf32> -> vector<8x384xf32>
    %7 = vector.extract_strided_slice %6 {offsets = [0, 0], sizes = [8, 32], strides = [1, 1]} : vector<8x384xf32> to vector<8x32xf32>
    %8 = vector.extract_strided_slice %6 {offsets = [0, 32], sizes = [8, 32], strides = [1, 1]} : vector<8x384xf32> to vector<8x32xf32>
    %9 = vector.extract_strided_slice %6 {offsets = [0, 64], sizes = [8, 32], strides = [1, 1]} : vector<8x384xf32> to vector<8x32xf32>
    %10 = vector.extract_strided_slice %6 {offsets = [0, 96], sizes = [8, 32], strides = [1, 1]} : vector<8x384xf32> to vector<8x32xf32>
    %11 = vector.shape_cast %7 : vector<8x32xf32> to vector<1x8x32xf32>
    %12 = vector.shape_cast %8 : vector<8x32xf32> to vector<1x8x32xf32>
    %13 = vector.shape_cast %9 : vector<8x32xf32> to vector<1x8x32xf32>
    %14 = vector.shape_cast %10 : vector<8x32xf32> to vector<1x8x32xf32>
    %15 = tpu.concatenate %11, %12, %13, %14 in 0 : vector<1x8x32xf32>, vector<1x8x32xf32>, vector<1x8x32xf32>, vector<1x8x32xf32> -> vector<4x8x32xf32>
    %16 = vector.extract_strided_slice %6 {offsets = [0, 128], sizes = [8, 32], strides = [1, 1]} : vector<8x384xf32> to vector<8x32xf32>
    %17 = vector.extract_strided_slice %6 {offsets = [0, 160], sizes = [8, 32], strides = [1, 1]} : vector<8x384xf32> to vector<8x32xf32>
    %18 = vector.extract_strided_slice %6 {offsets = [0, 192], sizes = [8, 32], strides = [1, 1]} : vector<8x384xf32> to vector<8x32xf32>
    %19 = vector.extract_strided_slice %6 {offsets = [0, 224], sizes = [8, 32], strides = [1, 1]} : vector<8x384xf32> to vector<8x32xf32>
    %20 = vector.shape_cast %16 : vector<8x32xf32> to vector<1x8x32xf32>
    %21 = vector.shape_cast %17 : vector<8x32xf32> to vector<1x8x32xf32>
    %22 = vector.shape_cast %18 : vector<8x32xf32> to vector<1x8x32xf32>
    %23 = vector.shape_cast %19 : vector<8x32xf32> to vector<1x8x32xf32>
    %24 = tpu.concatenate %20, %21, %22, %23 in 0 : vector<1x8x32xf32>, vector<1x8x32xf32>, vector<1x8x32xf32>, vector<1x8x32xf32> -> vector<4x8x32xf32>
    %25 = vector.extract_strided_slice %6 {offsets = [0, 256], sizes = [8, 32], strides = [1, 1]} : vector<8x384xf32> to vector<8x32xf32>
    %26 = vector.extract_strided_slice %6 {offsets = [0, 288], sizes = [8, 32], strides = [1, 1]} : vector<8x384xf32> to vector<8x32xf32>
    %27 = vector.extract_strided_slice %6 {offsets = [0, 320], sizes = [8, 32], strides = [1, 1]} : vector<8x384xf32> to vector<8x32xf32>
    %28 = vector.extract_strided_slice %6 {offsets = [0, 352], sizes = [8, 32], strides = [1, 1]} : vector<8x384xf32> to vector<8x32xf32>
    %29 = vector.shape_cast %25 : vector<8x32xf32> to vector<1x8x32xf32>
    %30 = vector.shape_cast %26 : vector<8x32xf32> to vector<1x8x32xf32>
    %31 = vector.shape_cast %27 : vector<8x32xf32> to vector<1x8x32xf32>
    %32 = vector.shape_cast %28 : vector<8x32xf32> to vector<1x8x32xf32>
    %33 = tpu.concatenate %29, %30, %31, %32 in 0 : vector<1x8x32xf32>, vector<1x8x32xf32>, vector<1x8x32xf32>, vector<1x8x32xf32> -> vector<4x8x32xf32>
    "tpu.trace_start"() <{level = 10 : i32, message = "htd,hsd->hts"}> : () -> ()
    %cst_5 = arith.constant dense<0.000000e+00> : vector<4x8x8xf32>
    %34 = tpu.matmul %15, %24, %cst_5 {dimension_numbers = #tpu.dot_dimension_numbers<[2], [2], [1], [1], [0, 0, 0, 1, 1, 1], [0], [0]>} : vector<4x8x32xf32>, vector<4x8x32xf32>, vector<4x8x8xf32> -> vector<4x8x8xf32>
    "tpu.trace_stop"() : () -> ()
    %cst_6 = arith.constant dense<0xFF800000> : vector<4x8xf32>
    %35 = vector.multi_reduction <maximumf>, %34, %cst_6 [2] : vector<4x8x8xf32> to vector<4x8xf32>
    %36 = vector.shape_cast %35 : vector<4x8xf32> to vector<4x8x1xf32>
    %37 = vector.broadcast %36 : vector<4x8x1xf32> to vector<4x8x8xf32>
    %38 = arith.subf %34, %37 : vector<4x8x8xf32>
    %39 = math.exp %38 : vector<4x8x8xf32>
    %cst_7 = arith.constant dense<0.000000e+00> : vector<4x8xf32>
    %40 = vector.multi_reduction <add>, %39, %cst_7 [2] : vector<4x8x8xf32> to vector<4x8xf32>
    %41 = vector.shape_cast %40 : vector<4x8xf32> to vector<4x8x1xf32>
    %42 = tpu.reciprocal %41 {approx = true} : vector<4x8x1xf32> -> vector<4x8x1xf32>
    %43 = vector.broadcast %42 : vector<4x8x1xf32> to vector<4x8x8xf32>
    %44 = arith.mulf %39, %43 : vector<4x8x8xf32>
    "tpu.trace_start"() <{level = 10 : i32, message = "hts,hsd->htd"}> : () -> ()
    %cst_8 = arith.constant dense<0.000000e+00> : vector<4x8x32xf32>
    %45 = tpu.matmul %44, %33, %cst_8 {dimension_numbers = #tpu.dot_dimension_numbers<[2], [1], [1], [2], [0, 0, 0, 1, 1, 2], [0], [0]>} : vector<4x8x8xf32>, vector<4x8x32xf32>, vector<4x8x32xf32> -> vector<4x8x32xf32>
    "tpu.trace_stop"() : () -> ()
    %cst_9 = arith.constant dense<0.000000e+00> : vector<8x32xf32>
    %46 = vector.multi_reduction <add>, %45, %cst_9 [0] : vector<4x8x32xf32> to vector<8x32xf32>
    %c0_10 = arith.constant 0 : index
    %c0_11 = arith.constant 0 : index
    %c0_12 = arith.constant 0 : index
    %47 = vector.load %arg5[%c0_10, %c0_11, %c0_12] : memref<1x1x32xf32, #tpu.memory_space<vmem>>, vector<1x1x32xf32>
    %48 = vector.shape_cast %47 : vector<1x1x32xf32> to vector<1x32xf32>
    %49 = vector.broadcast %48 : vector<1x32xf32> to vector<8x32xf32>
    %50 = arith.addf %46, %49 : vector<8x32xf32>
    %51 = arith.addf %50, %3 : vector<8x32xf32>
    %c0_13 = arith.constant 0 : index
    %c0_14 = arith.constant 0 : index
    %c0_15 = arith.constant 0 : index
    %52 = vector.load %arg6[%c0_13, %c0_14, %c0_15] : memref<1x1x32xf32, #tpu.memory_space<vmem>>, vector<1x1x32xf32>
    %53 = vector.shape_cast %52 : vector<1x1x32xf32> to vector<1x32xf32>
    %c0_16 = arith.constant 0 : index
    %c0_17 = arith.constant 0 : index
    %c0_18 = arith.constant 0 : index
    %54 = vector.load %arg7[%c0_16, %c0_17, %c0_18] : memref<1x1x32xf32, #tpu.memory_space<vmem>>, vector<1x1x32xf32>
    %55 = vector.shape_cast %54 : vector<1x1x32xf32> to vector<1x32xf32>
    %cst_19 = arith.constant dense<0.000000e+00> : vector<8xf32>
    %56 = vector.multi_reduction <add>, %51, %cst_19 [1] : vector<8x32xf32> to vector<8xf32>
    %57 = vector.shape_cast %56 : vector<8xf32> to vector<8x1xf32>
    %cst_20 = arith.constant 3.200000e+01 : f32
    %58 = vector.broadcast %cst_20 : f32 to vector<8x1xf32>
    %59 = arith.divf %57, %58 : vector<8x1xf32>
    %60 = vector.broadcast %59 : vector<8x1xf32> to vector<8x32xf32>
    %61 = arith.subf %51, %60 : vector<8x32xf32>
    %62 = arith.mulf %61, %61 : vector<8x32xf32>
    %cst_21 = arith.constant dense<0.000000e+00> : vector<8xf32>
    %63 = vector.multi_reduction <add>, %62, %cst_21 [1] : vector<8x32xf32> to vector<8xf32>
    %64 = vector.shape_cast %63 : vector<8xf32> to vector<8x1xf32>
    %cst_22 = arith.constant 3.200000e+01 : f32
    %65 = vector.broadcast %cst_22 : f32 to vector<8x1xf32>
    %66 = arith.divf %64, %65 : vector<8x1xf32>
    %67 = vector.broadcast %59 : vector<8x1xf32> to vector<8x32xf32>
    %68 = arith.subf %51, %67 : vector<8x32xf32>
    %cst_23 = arith.constant 9.99999974E-6 : f32
    %69 = vector.broadcast %cst_23 : f32 to vector<8x1xf32>
    %70 = arith.addf %66, %69 : vector<8x1xf32>
    %71 = math.rsqrt %70 : vector<8x1xf32>
    %72 = vector.broadcast %71 : vector<8x1xf32> to vector<8x32xf32>
    %73 = arith.mulf %68, %72 : vector<8x32xf32>
    %74 = vector.broadcast %53 : vector<1x32xf32> to vector<8x32xf32>
    %75 = arith.mulf %73, %74 : vector<8x32xf32>
    %76 = vector.broadcast %55 : vector<1x32xf32> to vector<8x32xf32>
    %77 = arith.addf %75, %76 : vector<8x32xf32>
    %c0_24 = arith.constant 0 : index
    %c0_25 = arith.constant 0 : index
    %c0_26 = arith.constant 0 : index
    %78 = vector.load %arg8[%c0_24, %c0_25, %c0_26] : memref<1x32x128xf32, #tpu.memory_space<vmem>>, vector<1x32x128xf32>
    %79 = vector.shape_cast %78 : vector<1x32x128xf32> to vector<32x128xf32>
    %cst_27 = arith.constant dense<0.000000e+00> : vector<8x128xf32>
    %80 = tpu.matmul %77, %79, %cst_27 {dimension_numbers = #tpu.dot_dimension_numbers<[1], [0], [0], [1], [0, 0, 1, 1], [], []>} : vector<8x32xf32>, vector<32x128xf32>, vector<8x128xf32> -> vector<8x128xf32>
    %c0_28 = arith.constant 0 : index
    %c0_29 = arith.constant 0 : index
    %c0_30 = arith.constant 0 : index
    %81 = vector.load %arg9[%c0_28, %c0_29, %c0_30] : memref<1x1x128xf32, #tpu.memory_space<vmem>>, vector<1x1x128xf32>
    %82 = vector.shape_cast %81 : vector<1x1x128xf32> to vector<1x128xf32>
    %83 = vector.broadcast %82 : vector<1x128xf32> to vector<8x128xf32>
    %84 = arith.addf %80, %83 : vector<8x128xf32>
    %cst_31 = arith.constant 0.000000e+00 : f32
    %85 = vector.broadcast %cst_31 : f32 to vector<8x128xf32>
    %86 = arith.maximumf %84, %85 : vector<8x128xf32>
    %c0_32 = arith.constant 0 : index
    %c0_33 = arith.constant 0 : index
    %c0_34 = arith.constant 0 : index
    %87 = vector.load %arg10[%c0_32, %c0_33, %c0_34] : memref<1x128x32xf32, #tpu.memory_space<vmem>>, vector<1x128x32xf32>
    %88 = vector.shape_cast %87 : vector<1x128x32xf32> to vector<128x32xf32>
    %cst_35 = arith.constant dense<0.000000e+00> : vector<8x32xf32>
    %89 = tpu.matmul %86, %88, %cst_35 {dimension_numbers = #tpu.dot_dimension_numbers<[1], [0], [0], [1], [0, 0, 1, 1], [], []>} : vector<8x128xf32>, vector<128x32xf32>, vector<8x32xf32> -> vector<8x32xf32>
    %c0_36 = arith.constant 0 : index
    %c0_37 = arith.constant 0 : index
    %c0_38 = arith.constant 0 : index
    %90 = vector.load %arg11[%c0_36, %c0_37, %c0_38] : memref<1x1x32xf32, #tpu.memory_space<vmem>>, vector<1x1x32xf32>
    %91 = vector.shape_cast %90 : vector<1x1x32xf32> to vector<1x32xf32>
    %92 = vector.broadcast %91 : vector<1x32xf32> to vector<8x32xf32>
    %93 = arith.addf %89, %92 : vector<8x32xf32>
    %94 = arith.addf %93, %77 : vector<8x32xf32>
    %c0_39 = arith.constant 0 : index
    %c0_40 = arith.constant 0 : index
    %c0_41 = arith.constant 0 : index
    %95 = vector.load %arg12[%c0_39, %c0_40, %c0_41] : memref<1x1x32xf32, #tpu.memory_space<vmem>>, vector<1x1x32xf32>
    %96 = vector.shape_cast %95 : vector<1x1x32xf32> to vector<1x32xf32>
    %c0_42 = arith.constant 0 : index
    %c0_43 = arith.constant 0 : index
    %c0_44 = arith.constant 0 : index
    %97 = vector.load %arg13[%c0_42, %c0_43, %c0_44] : memref<1x1x32xf32, #tpu.memory_space<vmem>>, vector<1x1x32xf32>
    %98 = vector.shape_cast %97 : vector<1x1x32xf32> to vector<1x32xf32>
    %cst_45 = arith.constant dense<0.000000e+00> : vector<8xf32>
    %99 = vector.multi_reduction <add>, %94, %cst_45 [1] : vector<8x32xf32> to vector<8xf32>
    %100 = vector.shape_cast %99 : vector<8xf32> to vector<8x1xf32>
    %cst_46 = arith.constant 3.200000e+01 : f32
    %101 = vector.broadcast %cst_46 : f32 to vector<8x1xf32>
    %102 = arith.divf %100, %101 : vector<8x1xf32>
    %103 = vector.broadcast %102 : vector<8x1xf32> to vector<8x32xf32>
    %104 = arith.subf %94, %103 : vector<8x32xf32>
    %105 = arith.mulf %104, %104 : vector<8x32xf32>
    %cst_47 = arith.constant dense<0.000000e+00> : vector<8xf32>
    %106 = vector.multi_reduction <add>, %105, %cst_47 [1] : vector<8x32xf32> to vector<8xf32>
    %107 = vector.shape_cast %106 : vector<8xf32> to vector<8x1xf32>
    %cst_48 = arith.constant 3.200000e+01 : f32
    %108 = vector.broadcast %cst_48 : f32 to vector<8x1xf32>
    %109 = arith.divf %107, %108 : vector<8x1xf32>
    %110 = vector.broadcast %102 : vector<8x1xf32> to vector<8x32xf32>
    %111 = arith.subf %94, %110 : vector<8x32xf32>
    %cst_49 = arith.constant 9.99999974E-6 : f32
    %112 = vector.broadcast %cst_49 : f32 to vector<8x1xf32>
    %113 = arith.addf %109, %112 : vector<8x1xf32>
    %114 = math.rsqrt %113 : vector<8x1xf32>
    %115 = vector.broadcast %114 : vector<8x1xf32> to vector<8x32xf32>
    %116 = arith.mulf %111, %115 : vector<8x32xf32>
    %117 = vector.broadcast %96 : vector<1x32xf32> to vector<8x32xf32>
    %118 = arith.mulf %116, %117 : vector<8x32xf32>
    %119 = vector.broadcast %98 : vector<1x32xf32> to vector<8x32xf32>
    %120 = arith.addf %118, %119 : vector<8x32xf32>
    %c0_50 = arith.constant 0 : index
    %c0_51 = arith.constant 0 : index
    %121 = vector.load %arg17[%c0_50, %c0_51] : memref<8x32xf32, #tpu.memory_space<vmem>>, vector<8x32xf32>
    tpu.vector_store %arg17[%c0_50, %c0_51], %120 {strides = array<i32>} : memref<8x32xf32, #tpu.memory_space<vmem>>, vector<8x32xf32>,
    %c1_i32 = arith.constant 1 : i32
    %122 = arith.cmpi eq, %arg1, %c1_i32 : i32
    %123 = arith.extui %122 : i1 to i32
    %c0_i32_52 = arith.constant 0 : i32
    %124 = arith.cmpi ne, %123, %c0_i32_52 : i32
    scf.if %124 {
      %cst_53 = arith.constant dense<0xFF800000> : vector<32xf32>
      %125 = vector.multi_reduction <maximumf>, %120, %cst_53 [0] : vector<8x32xf32> to vector<32xf32>
      %126 = vector.shape_cast %125 : vector<32xf32> to vector<1x32xf32>
      %c0_54 = arith.constant 0 : index
      %c0_55 = arith.constant 0 : index
      %127 = vector.load %arg14[%c0_54, %c0_55] : memref<32x2xf32, #tpu.memory_space<vmem>>, vector<32x2xf32>
      %cst_56 = arith.constant dense<0.000000e+00> : vector<1x2xf32>
      %128 = tpu.matmul %126, %127, %cst_56 {dimension_numbers = #tpu.dot_dimension_numbers<[1], [0], [0], [1], [0, 0, 1, 1], [], []>} : vector<1x32xf32>, vector<32x2xf32>, vector<1x2xf32> -> vector<1x2xf32>
      %c0_57 = arith.constant 0 : index
      %c0_58 = arith.constant 0 : index
      %129 = vector.load %arg15[%c0_57, %c0_58] : memref<1x2xf32, #tpu.memory_space<vmem>>, vector<1x2xf32>
      %130 = arith.addf %128, %129 : vector<1x2xf32>
      %c0_59 = arith.constant 0 : index
      %c0_60 = arith.constant 0 : index
      %c0_61 = arith.constant 0 : index
      %131 = vector.load %arg16[%c0_59, %c0_60, %c0_61] : memref<1x1x2xf32, #tpu.memory_space<vmem>>, vector<1x1x2xf32>
      %132 = vector.shape_cast %131 : vector<1x1x2xf32> to vector<1x2xf32>
      %133 = vector.shape_cast %130 : vector<1x2xf32> to vector<1x1x2xf32>
      tpu.vector_store %arg16[%c0_59, %c0_60, %c0_61], %133 {strides = array<i32>} : memref<1x1x2xf32, #tpu.memory_space<vmem>>, vector<1x1x2xf32>,
    } else {
    }
    return
  }
  func.func @transform_0(%arg0: i32, %arg1: i32) -> (i32, i32, i32) {
    %c0_i32 = arith.constant 0 : i32
    %c0_i32_0 = arith.constant 0 : i32
    %c0_i32_1 = arith.constant 0 : i32
    return %arg0, %c0_i32, %c0_i32_0 : i32, i32, i32
  }
  func.func @transform_1(%arg0: i32, %arg1: i32) -> (i32, i32) {
    %c0_i32 = arith.constant 0 : i32
    %c0_i32_0 = arith.constant 0 : i32
    %c0_i32_1 = arith.constant 0 : i32
    return %c0_i32, %c0_i32_0 : i32, i32
  }
  func.func @transform_2(%arg0: i32, %arg1: i32) -> (i32, i32, i32) {
    %c0_i32 = arith.constant 0 : i32
    %c0_i32_0 = arith.constant 0 : i32
    %c0_i32_1 = arith.constant 0 : i32
    return %arg1, %c0_i32, %c0_i32_0 : i32, i32, i32
  }
  func.func @transform_3(%arg0: i32, %arg1: i32) -> (i32, i32, i32) {
    %c0_i32 = arith.constant 0 : i32
    %c0_i32_0 = arith.constant 0 : i32
    %c0_i32_1 = arith.constant 0 : i32
    return %arg1, %c0_i32, %c0_i32_0 : i32, i32, i32
  }
  func.func @transform_4(%arg0: i32, %arg1: i32) -> (i32, i32, i32) {
    %c0_i32 = arith.constant 0 : i32
    %c0_i32_0 = arith.constant 0 : i32
    %c0_i32_1 = arith.constant 0 : i32
    return %arg1, %c0_i32, %c0_i32_0 : i32, i32, i32
  }
  func.func @transform_5(%arg0: i32, %arg1: i32) -> (i32, i32, i32) {
    %c0_i32 = arith.constant 0 : i32
    %c0_i32_0 = arith.constant 0 : i32
    %c0_i32_1 = arith.constant 0 : i32
    return %arg1, %c0_i32, %c0_i32_0 : i32, i32, i32
  }
  func.func @transform_6(%arg0: i32, %arg1: i32) -> (i32, i32, i32) {
    %c0_i32 = arith.constant 0 : i32
    %c0_i32_0 = arith.constant 0 : i32
    %c0_i32_1 = arith.constant 0 : i32
    return %arg1, %c0_i32, %c0_i32_0 : i32, i32, i32
  }
  func.func @transform_7(%arg0: i32, %arg1: i32) -> (i32, i32, i32) {
    %c0_i32 = arith.constant 0 : i32
    %c0_i32_0 = arith.constant 0 : i32
    %c0_i32_1 = arith.constant 0 : i32
    return %arg1, %c0_i32, %c0_i32_0 : i32, i32, i32
  }
  func.func @transform_8(%arg0: i32, %arg1: i32) -> (i32, i32, i32) {
    %c0_i32 = arith.constant 0 : i32
    %c0_i32_0 = arith.constant 0 : i32
    %c0_i32_1 = arith.constant 0 : i32
    return %arg1, %c0_i32, %c0_i32_0 : i32, i32, i32
  }
  func.func @transform_9(%arg0: i32, %arg1: i32) -> (i32, i32, i32) {
    %c0_i32 = arith.constant 0 : i32
    %c0_i32_0 = arith.constant 0 : i32
    %c0_i32_1 = arith.constant 0 : i32
    return %arg1, %c0_i32, %c0_i32_0 : i32, i32, i32
  }
  func.func @transform_10(%arg0: i32, %arg1: i32) -> (i32, i32, i32) {
    %c0_i32 = arith.constant 0 : i32
    %c0_i32_0 = arith.constant 0 : i32
    %c0_i32_1 = arith.constant 0 : i32
    return %arg1, %c0_i32, %c0_i32_0 : i32, i32, i32
  }
  func.func @transform_11(%arg0: i32, %arg1: i32) -> (i32, i32, i32) {
    %c0_i32 = arith.constant 0 : i32
    %c0_i32_0 = arith.constant 0 : i32
    %c0_i32_1 = arith.constant 0 : i32
    return %arg1, %c0_i32, %c0_i32_0 : i32, i32, i32
  }
  func.func @transform_12(%arg0: i32, %arg1: i32) -> (i32, i32) {
    %c0_i32 = arith.constant 0 : i32
    %c0_i32_0 = arith.constant 0 : i32
    %c0_i32_1 = arith.constant 0 : i32
    return %c0_i32, %c0_i32_0 : i32, i32
  }
  func.func @transform_13(%arg0: i32, %arg1: i32) -> (i32, i32) {
    %c0_i32 = arith.constant 0 : i32
    %c0_i32_0 = arith.constant 0 : i32
    %c0_i32_1 = arith.constant 0 : i32
    return %c0_i32, %c0_i32_0 : i32, i32
  }
  func.func @transform_14(%arg0: i32, %arg1: i32) -> (i32, i32, i32) {
    %c0_i32 = arith.constant 0 : i32
    %c0_i32_0 = arith.constant 0 : i32
    %c0_i32_1 = arith.constant 0 : i32
    return %arg0, %c0_i32, %c0_i32_0 : i32, i32, i32
  }
}

</mosaic_0001>

<llo_original>
// kernel: rtransformer_forward.1
$region0: #{rtransformer_forward.1}
  #allocation0 [shape = 'u32[]', space=smem, size = 0x4, offset = 0x4, fixed_abs, tag = 'smem constant byte address 0x4 - core index']
  #allocation1 [shape = 'u32[144,128]{1,0:T(1,128)}', space=vmem, size = 0x12000, scoped, tag = 'internal scratch']
  #allocation2 [shape = 'f32[8,32]{1,0:T(8,128)}', space=vmem, size = 0x1000, scoped, tag = 'scratch operand']
  %s0 = inlined_call_operand.hbm [shape: f32[2,8,32], index: 0, kind: input, shape index: {}]
  %s1 = inlined_call_operand.vmem [shape: f32[8,32], index: 1, kind: input, shape index: {}]
  %s2 = inlined_call_operand.hbm [shape: f32[2,32,384], index: 2, kind: input, shape index: {}]
  %s3 = inlined_call_operand.vmem [shape: f32[2,1,32], index: 3, kind: input, shape index: {}]
  %s4 = inlined_call_operand.vmem [shape: f32[2,1,32], index: 4, kind: input, shape index: {}, may-alias: {4,10}]
  %s5 = inlined_call_operand.vmem [shape: f32[2,1,32], index: 5, kind: input, shape index: {}, may-alias: {5,11}]
  %s6 = inlined_call_operand.hbm [shape: f32[2,32,128], index: 6, kind: input, shape index: {}]
  %s7 = inlined_call_operand.vmem [shape: f32[2,1,128], index: 7, kind: input, shape index: {}]
  %s8 = inlined_call_operand.hbm [shape: f32[2,128,32], index: 8, kind: input, shape index: {}]
  %s9 = inlined_call_operand.vmem [shape: f32[2,1,32], index: 9, kind: input, shape index: {}]
  %s10 = inlined_call_operand.vmem [shape: f32[2,1,32], index: 10, kind: input, shape index: {}, may-alias: {4,10}]
  %s11 = inlined_call_operand.vmem [shape: f32[2,1,32], index: 11, kind: input, shape index: {}, may-alias: {5,11}]
  %s12 = inlined_call_operand.hbm [shape: f32[32,2], index: 12, kind: input, shape index: {}]
  %s13 = inlined_call_operand.vmem [shape: f32[1,2], index: 13, kind: input, shape index: {}]
  %s14 = inlined_call_operand.vmem [shape: f32[2,1,2], index: 14, kind: output, shape index: {}]
  %s15 = sld [smem:[#allocation0]]
  $region117: #{rtransformer_forward.1} parent=0
    _
  %s17 = ssub.s32 1, %s15
  %s18 = scalar_select 0, %s17, %s15
  $region1: #{rtransformer_forward.1} parent=0
    #allocation3 [shape = 'u8[8192]{0}', space=vmem, size = 0x2000, scoped, tag = 'input window, operand 0']
    #allocation4 [shape = 's32[2]{0}', space=sflag, size = 0x8, scoped, tag = 'scoped memory for rtransformer_forward.1']
    #allocation5 [shape = 'u8[98304]{0}', space=vmem, size = 0x18000, scoped, tag = 'input window, operand 2']
    #allocation6 [shape = 's32[2]{0}', space=sflag, size = 0x8, scoped, tag = 'scoped memory for rtransformer_forward.1']
    #allocation7 [shape = 'u8[32768]{0}', space=vmem, size = 0x8000, scoped, tag = 'input window, operand 6']
    #allocation8 [shape = 'u8[131072]{0}', space=vmem, size = 0x20000, scoped, tag = 'input window, operand 8']
    #allocation9 [shape = 's32[2]{0}', space=sflag, size = 0x8, scoped, tag = 'scoped memory for rtransformer_forward.1']
    #allocation10 [shape = 'u8[16384]{0}', space=vmem, size = 0x4000, scoped, tag = 'input window, operand 12, single buffered']
    %19 = vsyncpa [#allocation4], 0
    %s20 = scalar_lea.sflag [#allocation4], 1
    %21 = vsyncpa %s20, 0
    %22 = vsyncpa [#allocation6], 0
    %s23 = scalar_lea.sflag [#allocation6], 1
    %24 = vsyncpa %s23, 0
    %25 = vsyncpa [#allocation9], 0
    %s26 = scalar_lea.sflag [#allocation9], 1
    %27 = vsyncpa %s26, 0
    loop: start=0, step=1, limit=6
    $region2: #{rtransformer_forward.1} parent=1 // loop_pre_header
      _
    $region3: #{rtransformer_forward.1} parent=1 // loop_header
      %s29 = sphi 0, %s33
      %p30 = scmp.ge.s32.totalorder %s29, 6
      %s36 = sphi 0, %s48
      %s37 = sphi 0, %s44
      %s38 = sphi 0, %s36
      %s39 = sphi 0, %s37
      %s40 = sphi 0, %s38
      %s41 = sphi 0, %s39
      %s51 = sphi 0, %s53
      %s54 = sphi 0, %s51
      %s55 = sphi 0, %s54
      %s71 = sphi 0, %s55
      %s75 = sphi 0, %s75
      %s77 = sphi 0, %s75
      %s78 = sphi 0, %s77
      %s92 = sphi 0, %s78
      %s98 = sphi 0, %s100
      %s101 = sphi 0, %s98
      %s102 = sphi 0, %s101
      %s118 = sphi 0, %s102
      %s124 = sphi 0, %s126
      %s127 = sphi 0, %s124
      %s128 = sphi 0, %s127
      %s144 = sphi 0, %s128
      %s150 = sphi 0, %s152
      %s153 = sphi 0, %s150
      %s154 = sphi 0, %s153
      %s170 = sphi 0, %s154
      %s176 = sphi 0, %s178
      %s179 = sphi 0, %s176
      %s180 = sphi 0, %s179
      %s196 = sphi 0, %s180
      %s202 = sphi 0, %s204
      %s205 = sphi 0, %s202
      %s206 = sphi 0, %s205
      %s222 = sphi 0, %s206
      %s228 = sphi 0, %s230
      %s231 = sphi 0, %s228
      %s232 = sphi 0, %s231
      %s248 = sphi 0, %s232
      %s254 = sphi 0, %s256
      %s257 = sphi 0, %s254
      %s258 = sphi 0, %s257
      %s274 = sphi 0, %s258
      %s280 = sphi 0, %s282
      %s283 = sphi 0, %s280
      %s284 = sphi 0, %s283
      %s300 = sphi 0, %s284
      %s306 = sphi 0, %s308
      %s309 = sphi 0, %s306
      %s310 = sphi 0, %s309
      %s326 = sphi 0, %s310
      %s332 = sphi 0, %s334
      %s335 = sphi 0, %s332
      %s336 = sphi 0, %s335
      %s352 = sphi 0, %s336
      %s356 = sphi 0, %s356
      %s358 = sphi 0, %s356
      %s359 = sphi 0, %s358
      %s373 = sphi 0, %s359
      %s377 = sphi 0, %s377
      %s379 = sphi 0, %s377
      %s380 = sphi 0, %s379
      %s394 = sphi 0, %s380
      %s400 = sphi 0, %s402
      %s403 = sphi 0, %s400
      %s404 = sphi 0, %s403
      %s420 = sphi 0, %s404
    $region4: #{rtransformer_forward.1} parent=1 // loop_header_branch
      %32 = sbr.rel (%p30) target = $region8
    $region5: #{rtransformer_forward.1} parent=1 // loop_body
      %s34 = ssub.s32 %s29, 1
      %s35 = ssub.s32 %s29, 2
      %s42 = sadd.s32 1, %s37
      %p43 = scmp.ge.s32.totalorder %s42, 2
      %s44 = scalar_select %p43, 0, %s42
      %s45 = sadd.s32 1, %s36
      %s46 = scalar_select %p43, %s45, %s36
      %p47 = scmp.ge.s32.totalorder %s46, 2
      %s48 = scalar_select %p47, 0, %s46
      %s49 = ssub.s32 %s36, %s48
      %p50 = scmp.eq.s32.totalorder %s49, 0
      %s52 = sadd.s32 %s51, 1
      %s53 = scalar_select %p50, %s51, %s52
      %p56 = pneg %p50
      %p57 = scmp.eq.s32.totalorder %s29, 3
      %p58 = por %p56, %p57
      %p59 = scmp.ne.s32.totalorder %s51, %s54
      %p60 = scmp.eq.s32.totalorder %s29, 0
      %p61 = por %p59, %p60
      %p62 = scmp.ne.s32.totalorder %s51, %s54
      %p63 = scmp.eq.s32.totalorder %s34, 3
      %p64 = por %p62, %p63
      %p65 = scmp.ne.s32.totalorder %s54, %s55
      %p66 = scmp.eq.s32.totalorder %s34, 0
      %p67 = por %p65, %p66
      %p68 = scmp.ne.s32.totalorder %s54, %s55
      %p69 = scmp.eq.s32.totalorder %s35, 3
      %p70 = por %p68, %p69
      %p72 = scmp.ne.s32.totalorder %s55, %s71
      %p73 = scmp.eq.s32.totalorder %s35, 0
      %p74 = por %p72, %p73
      %s76 = sadd.s32 %s75, 1
      %p79 = scmp.eq.s32.totalorder %s29, 3
      %p80 = scmp.ne.s32.totalorder %s75, %s77
      %p81 = scmp.eq.s32.totalorder %s29, 0
      %p82 = por %p80, %p81
      %p83 = scmp.ne.s32.totalorder %s75, %s77
      %p84 = scmp.eq.s32.totalorder %s34, 3
      %p85 = por %p83, %p84
      %p86 = scmp.ne.s32.totalorder %s77, %s78
      %p87 = scmp.eq.s32.totalorder %s34, 0
      %p88 = por %p86, %p87
      %p89 = scmp.ne.s32.totalorder %s77, %s78
      %p90 = scmp.eq.s32.totalorder %s35, 3
      %p91 = por %p89, %p90
      %p93 = scmp.ne.s32.totalorder %s78, %s92
      %p94 = scmp.eq.s32.totalorder %s35, 0
      %p95 = por %p93, %p94
      %s96 = ssub.s32 %s37, %s44
      %p97 = scmp.eq.s32.totalorder %s96, 0
      %s99 = sadd.s32 %s98, 1
      %s100 = scalar_select %p97, %s98, %s99
      %p103 = pneg %p97
      %p104 = scmp.eq.s32.totalorder %s29, 3
      %p105 = por %p103, %p104
      %p106 = scmp.ne.s32.totalorder %s98, %s101
      %p107 = scmp.eq.s32.totalorder %s29, 0
      %p108 = por %p106, %p107
      %p109 = scmp.ne.s32.totalorder %s98, %s101
      %p110 = scmp.eq.s32.totalorder %s34, 3
      %p111 = por %p109, %p110
      %p112 = scmp.ne.s32.totalorder %s101, %s102
      %p113 = scmp.eq.s32.totalorder %s34, 0
      %p114 = por %p112, %p113
      %p115 = scmp.ne.s32.totalorder %s101, %s102
      %p116 = scmp.eq.s32.totalorder %s35, 3
      %p117 = por %p115, %p116
      %p119 = scmp.ne.s32.totalorder %s102, %s118
      %p120 = scmp.eq.s32.totalorder %s35, 0
      %p121 = por %p119, %p120
      %s122 = ssub.s32 %s37, %s44
      %p123 = scmp.eq.s32.totalorder %s122, 0
      %s125 = sadd.s32 %s124, 1
      %s126 = scalar_select %p123, %s124, %s125
      %p129 = pneg %p123
      %p130 = scmp.eq.s32.totalorder %s29, 3
      %p131 = por %p129, %p130
      %p132 = scmp.ne.s32.totalorder %s124, %s127
      %p133 = scmp.eq.s32.totalorder %s29, 0
      %p134 = por %p132, %p133
      %p135 = scmp.ne.s32.totalorder %s124, %s127
      %p136 = scmp.eq.s32.totalorder %s34, 3
      %p137 = por %p135, %p136
      %p138 = scmp.ne.s32.totalorder %s127, %s128
      %p139 = scmp.eq.s32.totalorder %s34, 0
      %p140 = por %p138, %p139
      %p141 = scmp.ne.s32.totalorder %s127, %s128
      %p142 = scmp.eq.s32.totalorder %s35, 3
      %p143 = por %p141, %p142
      %p145 = scmp.ne.s32.totalorder %s128, %s144
      %p146 = scmp.eq.s32.totalorder %s35, 0
      %p147 = por %p145, %p146
      %s148 = ssub.s32 %s37, %s44
      %p149 = scmp.eq.s32.totalorder %s148, 0
      %s151 = sadd.s32 %s150, 1
      %s152 = scalar_select %p149, %s150, %s151
      %p155 = pneg %p149
      %p156 = scmp.eq.s32.totalorder %s29, 3
      %p157 = por %p155, %p156
      %p158 = scmp.ne.s32.totalorder %s150, %s153
      %p159 = scmp.eq.s32.totalorder %s29, 0
      %p160 = por %p158, %p159
      %p161 = scmp.ne.s32.totalorder %s150, %s153
      %p162 = scmp.eq.s32.totalorder %s34, 3
      %p163 = por %p161, %p162
      %p164 = scmp.ne.s32.totalorder %s153, %s154
      %p165 = scmp.eq.s32.totalorder %s34, 0
      %p166 = por %p164, %p165
      %p167 = scmp.ne.s32.totalorder %s153, %s154
      %p168 = scmp.eq.s32.totalorder %s35, 3
      %p169 = por %p167, %p168
      %p171 = scmp.ne.s32.totalorder %s154, %s170
      %p172 = scmp.eq.s32.totalorder %s35, 0
      %p173 = por %p171, %p172
      %s174 = ssub.s32 %s37, %s44
      %p175 = scmp.eq.s32.totalorder %s174, 0
      %s177 = sadd.s32 %s176, 1
      %s178 = scalar_select %p175, %s176, %s177
      %p181 = pneg %p175
      %p182 = scmp.eq.s32.totalorder %s29, 3
      %p183 = por %p181, %p182
      %p184 = scmp.ne.s32.totalorder %s176, %s179
      %p185 = scmp.eq.s32.totalorder %s29, 0
      %p186 = por %p184, %p185
      %p187 = scmp.ne.s32.totalorder %s176, %s179
      %p188 = scmp.eq.s32.totalorder %s34, 3
      %p189 = por %p187, %p188
      %p190 = scmp.ne.s32.totalorder %s179, %s180
      %p191 = scmp.eq.s32.totalorder %s34, 0
      %p192 = por %p190, %p191
      %p193 = scmp.ne.s32.totalorder %s179, %s180
      %p194 = scmp.eq.s32.totalorder %s35, 3
      %p195 = por %p193, %p194
      %p197 = scmp.ne.s32.totalorder %s180, %s196
      %p198 = scmp.eq.s32.totalorder %s35, 0
      %p199 = por %p197, %p198
      %s200 = ssub.s32 %s37, %s44
      %p201 = scmp.eq.s32.totalorder %s200, 0
      %s203 = sadd.s32 %s202, 1
      %s204 = scalar_select %p201, %s202, %s203
      %p207 = pneg %p201
      %p208 = scmp.eq.s32.totalorder %s29, 3
      %p209 = por %p207, %p208
      %p210 = scmp.ne.s32.totalorder %s202, %s205
      %p211 = scmp.eq.s32.totalorder %s29, 0
      %p212 = por %p210, %p211
      %p213 = scmp.ne.s32.totalorder %s202, %s205
      %p214 = scmp.eq.s32.totalorder %s34, 3
      %p215 = por %p213, %p214
      %p216 = scmp.ne.s32.totalorder %s205, %s206
      %p217 = scmp.eq.s32.totalorder %s34, 0
      %p218 = por %p216, %p217
      %p219 = scmp.ne.s32.totalorder %s205, %s206
      %p220 = scmp.eq.s32.totalorder %s35, 3
      %p221 = por %p219, %p220
      %p223 = scmp.ne.s32.totalorder %s206, %s222
      %p224 = scmp.eq.s32.totalorder %s35, 0
      %p225 = por %p223, %p224
      %s226 = ssub.s32 %s37, %s44
      %p227 = scmp.eq.s32.totalorder %s226, 0
      %s229 = sadd.s32 %s228, 1
      %s230 = scalar_select %p227, %s228, %s229
      %p233 = pneg %p227
      %p234 = scmp.eq.s32.totalorder %s29, 3
      %p235 = por %p233, %p234
      %p236 = scmp.ne.s32.totalorder %s228, %s231
      %p237 = scmp.eq.s32.totalorder %s29, 0
      %p238 = por %p236, %p237
      %p239 = scmp.ne.s32.totalorder %s228, %s231
      %p240 = scmp.eq.s32.totalorder %s34, 3
      %p241 = por %p239, %p240
      %p242 = scmp.ne.s32.totalorder %s231, %s232
      %p243 = scmp.eq.s32.totalorder %s34, 0
      %p244 = por %p242, %p243
      %p245 = scmp.ne.s32.totalorder %s231, %s232
      %p246 = scmp.eq.s32.totalorder %s35, 3
      %p247 = por %p245, %p246
      %p249 = scmp.ne.s32.totalorder %s232, %s248
      %p250 = scmp.eq.s32.totalorder %s35, 0
      %p251 = por %p249, %p250
      %s252 = ssub.s32 %s37, %s44
      %p253 = scmp.eq.s32.totalorder %s252, 0
      %s255 = sadd.s32 %s254, 1
      %s256 = scalar_select %p253, %s254, %s255
      %p259 = pneg %p253
      %p260 = scmp.eq.s32.totalorder %s29, 3
      %p261 = por %p259, %p260
      %p262 = scmp.ne.s32.totalorder %s254, %s257
      %p263 = scmp.eq.s32.totalorder %s29, 0
      %p264 = por %p262, %p263
      %p265 = scmp.ne.s32.totalorder %s254, %s257
      %p266 = scmp.eq.s32.totalorder %s34, 3
      %p267 = por %p265, %p266
      %p268 = scmp.ne.s32.totalorder %s257, %s258
      %p269 = scmp.eq.s32.totalorder %s34, 0
      %p270 = por %p268, %p269
      %p271 = scmp.ne.s32.totalorder %s257, %s258
      %p272 = scmp.eq.s32.totalorder %s35, 3
      %p273 = por %p271, %p272
      %p275 = scmp.ne.s32.totalorder %s258, %s274
      %p276 = scmp.eq.s32.totalorder %s35, 0
      %p277 = por %p275, %p276
      %s278 = ssub.s32 %s37, %s44
      %p279 = scmp.eq.s32.totalorder %s278, 0
      %s281 = sadd.s32 %s280, 1
      %s282 = scalar_select %p279, %s280, %s281
      %p285 = pneg %p279
      %p286 = scmp.eq.s32.totalorder %s29, 3
      %p287 = por %p285, %p286
      %p288 = scmp.ne.s32.totalorder %s280, %s283
      %p289 = scmp.eq.s32.totalorder %s29, 0
      %p290 = por %p288, %p289
      %p291 = scmp.ne.s32.totalorder %s280, %s283
      %p292 = scmp.eq.s32.totalorder %s34, 3
      %p293 = por %p291, %p292
      %p294 = scmp.ne.s32.totalorder %s283, %s284
      %p295 = scmp.eq.s32.totalorder %s34, 0
      %p296 = por %p294, %p295
      %p297 = scmp.ne.s32.totalorder %s283, %s284
      %p298 = scmp.eq.s32.totalorder %s35, 3
      %p299 = por %p297, %p298
      %p301 = scmp.ne.s32.totalorder %s284, %s300
      %p302 = scmp.eq.s32.totalorder %s35, 0
      %p303 = por %p301, %p302
      %s304 = ssub.s32 %s37, %s44
      %p305 = scmp.eq.s32.totalorder %s304, 0
      %s307 = sadd.s32 %s306, 1
      %s308 = scalar_select %p305, %s306, %s307
      %p311 = pneg %p305
      %p312 = scmp.eq.s32.totalorder %s29, 3
      %p313 = por %p311, %p312
      %p314 = scmp.ne.s32.totalorder %s306, %s309
      %p315 = scmp.eq.s32.totalorder %s29, 0
      %p316 = por %p314, %p315
      %p317 = scmp.ne.s32.totalorder %s306, %s309
      %p318 = scmp.eq.s32.totalorder %s34, 3
      %p319 = por %p317, %p318
      %p320 = scmp.ne.s32.totalorder %s309, %s310
      %p321 = scmp.eq.s32.totalorder %s34, 0
      %p322 = por %p320, %p321
      %p323 = scmp.ne.s32.totalorder %s309, %s310
      %p324 = scmp.eq.s32.totalorder %s35, 3
      %p325 = por %p323, %p324
      %p327 = scmp.ne.s32.totalorder %s310, %s326
      %p328 = scmp.eq.s32.totalorder %s35, 0
      %p329 = por %p327, %p328
      %s330 = ssub.s32 %s37, %s44
      %p331 = scmp.eq.s32.totalorder %s330, 0
      %s333 = sadd.s32 %s332, 1
      %s334 = scalar_select %p331, %s332, %s333
      %p337 = pneg %p331
      %p338 = scmp.eq.s32.totalorder %s29, 3
      %p339 = por %p337, %p338
      %p340 = scmp.ne.s32.totalorder %s332, %s335
      %p341 = scmp.eq.s32.totalorder %s29, 0
      %p342 = por %p340, %p341
      %p343 = scmp.ne.s32.totalorder %s332, %s335
      %p344 = scmp.eq.s32.totalorder %s34, 3
      %p345 = por %p343, %p344
      %p346 = scmp.ne.s32.totalorder %s335, %s336
      %p347 = scmp.eq.s32.totalorder %s34, 0
      %p348 = por %p346, %p347
      %p349 = scmp.ne.s32.totalorder %s335, %s336
      %p350 = scmp.eq.s32.totalorder %s35, 3
      %p351 = por %p349, %p350
      %p353 = scmp.ne.s32.totalorder %s336, %s352
      %p354 = scmp.eq.s32.totalorder %s35, 0
      %p355 = por %p353, %p354
      %s357 = sadd.s32 %s356, 1
      %p360 = scmp.eq.s32.totalorder %s29, 3
      %p361 = scmp.ne.s32.totalorder %s356, %s358
      %p362 = scmp.eq.s32.totalorder %s29, 0
      %p363 = por %p361, %p362
      %p364 = scmp.ne.s32.totalorder %s356, %s358
      %p365 = scmp.eq.s32.totalorder %s34, 3
      %p366 = por %p364, %p365
      %p367 = scmp.ne.s32.totalorder %s358, %s359
      %p368 = scmp.eq.s32.totalorder %s34, 0
      %p369 = por %p367, %p368
      %p370 = scmp.ne.s32.totalorder %s358, %s359
      %p371 = scmp.eq.s32.totalorder %s35, 3
      %p372 = por %p370, %p371
      %p374 = scmp.ne.s32.totalorder %s359, %s373
      %p375 = scmp.eq.s32.totalorder %s35, 0
      %p376 = por %p374, %p375
      %s378 = sadd.s32 %s377, 1
      %p381 = scmp.eq.s32.totalorder %s29, 3
      %p382 = scmp.ne.s32.totalorder %s377, %s379
      %p383 = scmp.eq.s32.totalorder %s29, 0
      %p384 = por %p382, %p383
      %p385 = scmp.ne.s32.totalorder %s377, %s379
      %p386 = scmp.eq.s32.totalorder %s34, 3
      %p387 = por %p385, %p386
      %p388 = scmp.ne.s32.totalorder %s379, %s380
      %p389 = scmp.eq.s32.totalorder %s34, 0
      %p390 = por %p388, %p389
      %p391 = scmp.ne.s32.totalorder %s379, %s380
      %p392 = scmp.eq.s32.totalorder %s35, 3
      %p393 = por %p391, %p392
      %p395 = scmp.ne.s32.totalorder %s380, %s394
      %p396 = scmp.eq.s32.totalorder %s35, 0
      %p397 = por %p395, %p396
      %s398 = ssub.s32 %s36, %s48
      %p399 = scmp.eq.s32.totalorder %s398, 0
      %s401 = sadd.s32 %s400, 1
      %s402 = scalar_select %p399, %s400, %s401
      %p405 = pneg %p399
      %p406 = scmp.eq.s32.totalorder %s29, 3
      %p407 = por %p405, %p406
      %p408 = scmp.ne.s32.totalorder %s400, %s403
      %p409 = scmp.eq.s32.totalorder %s29, 0
      %p410 = por %p408, %p409
      %p411 = scmp.ne.s32.totalorder %s400, %s403
      %p412 = scmp.eq.s32.totalorder %s34, 3
      %p413 = por %p411, %p412
      %p414 = scmp.ne.s32.totalorder %s403, %s404
      %p415 = scmp.eq.s32.totalorder %s34, 0
      %p416 = por %p414, %p415
      %p417 = scmp.ne.s32.totalorder %s403, %s404
      %p418 = scmp.eq.s32.totalorder %s35, 3
      %p419 = por %p417, %p418
      %p421 = scmp.ne.s32.totalorder %s404, %s420
      %p422 = scmp.eq.s32.totalorder %s35, 0
      %p423 = por %p421, %p422
      %p424 = scmp.le.s32.totalorder 1, %s29
      %p425 = scmp.lt.s32.totalorder %s29, 5
      %p426 = pnand %p424, %p425
      %p427 = pneg %p426
      // Predicated region
      $region9: #{rtransformer_forward.1} parent=5 // pred_check
        _
      $region10: #{rtransformer_forward.1} parent=5 // pred_check_branch
        %429 = sbr.rel (%p426) target = $region12
      $region11: #{rtransformer_forward.1} parent=5 // pred_region
        %s430 = ssub.s32 %s29, 1
        // Predicated region
        $region13: #{rtransformer_forward.1} parent=11 // pred_check
          %p431 = pneg %p88
        $region14: #{rtransformer_forward.1} parent=11 // pred_check_branch
          %433 = sbr.rel (%p431) target = $region16
        $region15: #{rtransformer_forward.1} parent=11 // pred_region
          _
        $region16: #{rtransformer_forward.1} parent=11 // pred_fallthru
          _
        // Predicated region
        $region17: #{rtransformer_forward.1} parent=11 // pred_check
          %p434 = pneg %p369
        $region18: #{rtransformer_forward.1} parent=11 // pred_check_branch
          %436 = sbr.rel (%p434) target = $region20
        $region19: #{rtransformer_forward.1} parent=11 // pred_region
          %s438 = ssub.s32 512, 512
          %439 = vsyncadd [#allocation9], %s438
          %s440 = sshll.u32 [#allocation10], 4
          %s441 = int_to_ptr.vmem [resolvable:$true] %s440
          %446 = dma.hbm_to_vmem [thread:$0]  %s12, 512, %s441, [#allocation9], 128, 128, 8
        $region20: #{rtransformer_forward.1} parent=11 // pred_fallthru
          _
        // Predicated region
        $region21: #{rtransformer_forward.1} parent=11 // pred_check
          %p447 = pneg %p390
        $region22: #{rtransformer_forward.1} parent=11 // pred_check_branch
          %449 = sbr.rel (%p447) target = $region24
        $region23: #{rtransformer_forward.1} parent=11 // pred_region
          _
        $region24: #{rtransformer_forward.1} parent=11 // pred_fallthru
          _
      $region12: #{rtransformer_forward.1} parent=5 // pred_fallthru
        _
      %p450 = scmp.lt.s32.totalorder %s29, 4
      // Predicated region
      $region25: #{rtransformer_forward.1} parent=5 // pred_check
        %p451 = pneg %p450
      $region26: #{rtransformer_forward.1} parent=5 // pred_check_branch
        %453 = sbr.rel (%p451) target = $region28
      $region27: #{rtransformer_forward.1} parent=5 // pred_region
        // Predicated region
        $region29: #{rtransformer_forward.1} parent=27 // pred_check
          %p454 = pneg %p61
        $region30: #{rtransformer_forward.1} parent=27 // pred_check_branch
          %456 = sbr.rel (%p454) target = $region32
        $region31: #{rtransformer_forward.1} parent=27 // pred_region
          %s457 = sand.u32 %s51, 1
          %s458 = scalar_lea.sflag [#allocation4], %s457
          %s459 = sand.u32 %s51, 1
          %s460 = smul.addr %s459, 8
          %s461 = scalar_lea.vmem [#allocation3], %s460
          %s463 = ssub.s32 128, 128
          %464 = vsyncadd %s458, %s463
          %s465 = smul.addr %s36, 128
          %s466 = scalar_lea.hbm %s0, %s465
          %s468 = sshll.u32 %s461, 4
          %s469 = int_to_ptr.vmem [resolvable:$true] %s468
          %471 = dma.hbm_to_vmem [thread:$0]  %s466, 128, %s469, %s458
        $region32: #{rtransformer_forward.1} parent=27 // pred_fallthru
          _
        // Predicated region
        $region33: #{rtransformer_forward.1} parent=27 // pred_check
          %p472 = pneg %p108
        $region34: #{rtransformer_forward.1} parent=27 // pred_check_branch
          %474 = sbr.rel (%p472) target = $region36
        $region35: #{rtransformer_forward.1} parent=27 // pred_region
          %s475 = sand.u32 %s29, 1
          %s476 = scalar_lea.sflag [#allocation6], %s475
          %s477 = sand.u32 %s98, 1
          %s478 = smul.addr %s477, 96
          %s479 = scalar_lea.vmem [#allocation5], %s478
          %s481 = ssub.s32 1536, 1536
          %482 = vsyncadd %s476, %s481
          %s483 = smul.addr %s37, 12
          %s484 = smul.addr %s483, 128
          %s485 = scalar_lea.hbm %s2, %s484
          %s486 = sshll.u32 %s479, 4
          %s487 = int_to_ptr.vmem [resolvable:$true] %s486
          %492 = dma.hbm_to_vmem [thread:$0]  %s485, 1536, %s487, %s476, 384, 384, 24
        $region36: #{rtransformer_forward.1} parent=27 // pred_fallthru
          _
        // Predicated region
        $region37: #{rtransformer_forward.1} parent=27 // pred_check
          %p493 = pneg %p134
        $region38: #{rtransformer_forward.1} parent=27 // pred_check_branch
          %495 = sbr.rel (%p493) target = $region40
        $region39: #{rtransformer_forward.1} parent=27 // pred_region
          %p496 = scmp.lt.s32.totalorder %s37, 1
          %s497 = scalar_select %p496, %s37, 1
          %s498 = scalar_lea.vmem %s3, %s497
        $region40: #{rtransformer_forward.1} parent=27 // pred_fallthru
          _
        // Predicated region
        $region41: #{rtransformer_forward.1} parent=27 // pred_check
          %p499 = pneg %p160
        $region42: #{rtransformer_forward.1} parent=27 // pred_check_branch
          %501 = sbr.rel (%p499) target = $region44
        $region43: #{rtransformer_forward.1} parent=27 // pred_region
          %p502 = scmp.lt.s32.totalorder %s37, 1
          %s503 = scalar_select %p502, %s37, 1
          %s504 = scalar_lea.vmem %s4, %s503
        $region44: #{rtransformer_forward.1} parent=27 // pred_fallthru
          _
        // Predicated region
        $region45: #{rtransformer_forward.1} parent=27 // pred_check
          %p505 = pneg %p186
        $region46: #{rtransformer_forward.1} parent=27 // pred_check_branch
          %507 = sbr.rel (%p505) target = $region48
        $region47: #{rtransformer_forward.1} parent=27 // pred_region
          %p508 = scmp.lt.s32.totalorder %s37, 1
          %s509 = scalar_select %p508, %s37, 1
          %s510 = scalar_lea.vmem %s5, %s509
        $region48: #{rtransformer_forward.1} parent=27 // pred_fallthru
          _
        // Predicated region
        $region49: #{rtransformer_forward.1} parent=27 // pred_check
          %p511 = pneg %p212
        $region50: #{rtransformer_forward.1} parent=27 // pred_check_branch
          %513 = sbr.rel (%p511) target = $region52
        $region51: #{rtransformer_forward.1} parent=27 // pred_region
          %s514 = sand.u32 %s29, 1
          %s515 = scalar_lea.sflag [#allocation6], %s514
          %s516 = sand.u32 %s202, 1
          %s517 = smul.addr %s516, 32
          %s518 = scalar_lea.vmem [#allocation7], %s517
          %s520 = ssub.s32 512, 512
          %521 = vsyncadd %s515, %s520
          %s522 = smul.addr %s37, 4
          %s523 = smul.addr %s522, 128
          %s524 = scalar_lea.hbm %s6, %s523
          %s525 = sshll.u32 %s518, 4
          %s526 = int_to_ptr.vmem [resolvable:$true] %s525
          %531 = dma.hbm_to_vmem [thread:$0]  %s524, 512, %s526, %s515, 128, 128, 8
        $region52: #{rtransformer_forward.1} parent=27 // pred_fallthru
          _
        // Predicated region
        $region53: #{rtransformer_forward.1} parent=27 // pred_check
          %p532 = pneg %p238
        $region54: #{rtransformer_forward.1} parent=27 // pred_check_branch
          %534 = sbr.rel (%p532) target = $region56
        $region55: #{rtransformer_forward.1} parent=27 // pred_region
          %p535 = scmp.lt.s32.totalorder %s37, 1
          %s536 = scalar_select %p535, %s37, 1
          %s537 = scalar_lea.vmem %s7, %s536
        $region56: #{rtransformer_forward.1} parent=27 // pred_fallthru
          _
        // Predicated region
        $region57: #{rtransformer_forward.1} parent=27 // pred_check
          %p538 = pneg %p264
        $region58: #{rtransformer_forward.1} parent=27 // pred_check_branch
          %540 = sbr.rel (%p538) target = $region60
        $region59: #{rtransformer_forward.1} parent=27 // pred_region
          %s541 = sand.u32 %s29, 1
          %s542 = scalar_lea.sflag [#allocation9], %s541
          %s543 = sand.u32 %s254, 1
          %s544 = smul.addr %s543, 128
          %s545 = scalar_lea.vmem [#allocation8], %s544
          %s547 = ssub.s32 2048, 2048
          %548 = vsyncadd %s542, %s547
          %s549 = smul.addr %s37, 16
          %s550 = smul.addr %s549, 128
          %s551 = scalar_lea.hbm %s8, %s550
          %s552 = sshll.u32 %s545, 4
          %s553 = int_to_ptr.vmem [resolvable:$true] %s552
          %558 = dma.hbm_to_vmem [thread:$0]  %s551, 2048, %s553, %s542, 128, 128, 8
        $region60: #{rtransformer_forward.1} parent=27 // pred_fallthru
          _
        // Predicated region
        $region61: #{rtransformer_forward.1} parent=27 // pred_check
          %p559 = pneg %p290
        $region62: #{rtransformer_forward.1} parent=27 // pred_check_branch
          %561 = sbr.rel (%p559) target = $region64
        $region63: #{rtransformer_forward.1} parent=27 // pred_region
          %p562 = scmp.lt.s32.totalorder %s37, 1
          %s563 = scalar_select %p562, %s37, 1
          %s564 = scalar_lea.vmem %s9, %s563
        $region64: #{rtransformer_forward.1} parent=27 // pred_fallthru
          _
        // Predicated region
        $region65: #{rtransformer_forward.1} parent=27 // pred_check
          %p565 = pneg %p316
        $region66: #{rtransformer_forward.1} parent=27 // pred_check_branch
          %567 = sbr.rel (%p565) target = $region68
        $region67: #{rtransformer_forward.1} parent=27 // pred_region
          %p568 = scmp.lt.s32.totalorder %s37, 1
          %s569 = scalar_select %p568, %s37, 1
          %s570 = scalar_lea.vmem %s10, %s569
        $region68: #{rtransformer_forward.1} parent=27 // pred_fallthru
          _
        // Predicated region
        $region69: #{rtransformer_forward.1} parent=27 // pred_check
          %p571 = pneg %p342
        $region70: #{rtransformer_forward.1} parent=27 // pred_check_branch
          %573 = sbr.rel (%p571) target = $region72
        $region71: #{rtransformer_forward.1} parent=27 // pred_region
          %p574 = scmp.lt.s32.totalorder %s37, 1
          %s575 = scalar_select %p574, %s37, 1
          %s576 = scalar_lea.vmem %s11, %s575
        $region72: #{rtransformer_forward.1} parent=27 // pred_fallthru
          _
      $region28: #{rtransformer_forward.1} parent=5 // pred_fallthru
        _
      %p577 = scmp.le.s32.totalorder 1, %s29
      %p578 = scmp.lt.s32.totalorder %s29, 5
      %p579 = pnand %p577, %p578
      %p580 = pneg %p579
      // Predicated region
      $region73: #{rtransformer_forward.1} parent=5 // pred_check
        _
      $region74: #{rtransformer_forward.1} parent=5 // pred_check_branch
        %582 = sbr.rel (%p579) target = $region76
      $region75: #{rtransformer_forward.1} parent=5 // pred_region
        %s583 = ssub.s32 %s29, 1
        %s584 = sand.u32 %s54, 1
        %s585 = scalar_lea.sflag [#allocation4], %s584
        %s586 = sand.u32 %s54, 1
        %s587 = smul.addr %s586, 8
        %s588 = scalar_lea.vmem [#allocation3], %s587
        // Predicated region
        $region77: #{rtransformer_forward.1} parent=75 // pred_check
          %p589 = pneg %p67
        $region78: #{rtransformer_forward.1} parent=75 // pred_check_branch
          %591 = sbr.rel (%p589) target = $region80
        $region79: #{rtransformer_forward.1} parent=75 // pred_region
          %592 = dma.done %s585, 128
        $region80: #{rtransformer_forward.1} parent=75 // pred_fallthru
          _
        %s593 = sand.u32 %s34, 1
        %s594 = scalar_lea.sflag [#allocation6], %s593
        %s595 = sand.u32 %s101, 1
        %s596 = smul.addr %s595, 96
        %s597 = scalar_lea.vmem [#allocation5], %s596
        // Predicated region
        $region81: #{rtransformer_forward.1} parent=75 // pred_check
          %p598 = pneg %p114
        $region82: #{rtransformer_forward.1} parent=75 // pred_check_branch
          %600 = sbr.rel (%p598) target = $region84
        $region83: #{rtransformer_forward.1} parent=75 // pred_region
          %601 = dma.done %s594, 1536
        $region84: #{rtransformer_forward.1} parent=75 // pred_fallthru
          _
        %s602 = sand.u32 %s34, 1
        %s603 = scalar_lea.sflag [#allocation6], %s602
        %s604 = sand.u32 %s205, 1
        %s605 = smul.addr %s604, 32
        %s606 = scalar_lea.vmem [#allocation7], %s605
        // Predicated region
        $region85: #{rtransformer_forward.1} parent=75 // pred_check
          %p607 = pneg %p218
        $region86: #{rtransformer_forward.1} parent=75 // pred_check_branch
          %609 = sbr.rel (%p607) target = $region88
        $region87: #{rtransformer_forward.1} parent=75 // pred_region
          %610 = dma.done %s603, 512
        $region88: #{rtransformer_forward.1} parent=75 // pred_fallthru
          _
        %s611 = sand.u32 %s34, 1
        %s612 = scalar_lea.sflag [#allocation9], %s611
        %s613 = sand.u32 %s257, 1
        %s614 = smul.addr %s613, 128
        %s615 = scalar_lea.vmem [#allocation8], %s614
        // Predicated region
        $region89: #{rtransformer_forward.1} parent=75 // pred_check
          %p616 = pneg %p270
        $region90: #{rtransformer_forward.1} parent=75 // pred_check_branch
          %618 = sbr.rel (%p616) target = $region92
        $region91: #{rtransformer_forward.1} parent=75 // pred_region
          %619 = dma.done %s612, 2048
        $region92: #{rtransformer_forward.1} parent=75 // pred_fallthru
          _
        // Predicated region
        $region93: #{rtransformer_forward.1} parent=75 // pred_check
          %p620 = pneg %p369
        $region94: #{rtransformer_forward.1} parent=75 // pred_check_branch
          %622 = sbr.rel (%p620) target = $region96
        $region95: #{rtransformer_forward.1} parent=75 // pred_region
          %623 = dma.done [#allocation9], 512
        $region96: #{rtransformer_forward.1} parent=75 // pred_fallthru
          _
        %s624 = sand.u32 %s54, 1
        %s625 = scalar_lea.sflag [#allocation4], %s624
        %s626 = sand.u32 %s54, 1
        %s627 = smul.addr %s626, 8
        %s628 = scalar_lea.vmem [#allocation3], %s627
        %p629 = pneg %p67
        %p630 = pneg %p64
        %p631 = pneg %p88
        %p632 = pneg %p85
        %s633 = sand.u32 %s34, 1
        %s634 = scalar_lea.sflag [#allocation6], %s633
        %s635 = sand.u32 %s101, 1
        %s636 = smul.addr %s635, 96
        %s637 = scalar_lea.vmem [#allocation5], %s636
        %p638 = pneg %p114
        %p639 = pneg %p111
        %p640 = scmp.lt.s32.totalorder %s39, 1
        %s641 = scalar_select %p640, %s39, 1
        %s642 = scalar_lea.vmem %s3, %s641
        %p643 = pneg %p140
        %p644 = pneg %p137
        %p645 = scmp.lt.s32.totalorder %s39, 1
        %s646 = scalar_select %p645, %s39, 1
        %s647 = scalar_lea.vmem %s4, %s646
        %p648 = pneg %p166
        %p649 = pneg %p163
        %p650 = scmp.lt.s32.totalorder %s39, 1
        %s651 = scalar_select %p650, %s39, 1
        %s652 = scalar_lea.vmem %s5, %s651
        %p653 = pneg %p192
        %p654 = pneg %p189
        %s655 = sand.u32 %s34, 1
        %s656 = scalar_lea.sflag [#allocation6], %s655
        %s657 = sand.u32 %s205, 1
        %s658 = smul.addr %s657, 32
        %s659 = scalar_lea.vmem [#allocation7], %s658
        %p660 = pneg %p218
        %p661 = pneg %p215
        %p662 = scmp.lt.s32.totalorder %s39, 1
        %s663 = scalar_select %p662, %s39, 1
        %s664 = scalar_lea.vmem %s7, %s663
        %p665 = pneg %p244
        %p666 = pneg %p241
        %s667 = sand.u32 %s34, 1
        %s668 = scalar_lea.sflag [#allocation9], %s667
        %s669 = sand.u32 %s257, 1
        %s670 = smul.addr %s669, 128
        %s671 = scalar_lea.vmem [#allocation8], %s670
        %p672 = pneg %p270
        %p673 = pneg %p267
        %p674 = scmp.lt.s32.totalorder %s39, 1
        %s675 = scalar_select %p674, %s39, 1
        %s676 = scalar_lea.vmem %s9, %s675
        %p677 = pneg %p296
        %p678 = pneg %p293
        %p679 = scmp.lt.s32.totalorder %s39, 1
        %s680 = scalar_select %p679, %s39, 1
        %s681 = scalar_lea.vmem %s10, %s680
        %p682 = pneg %p322
        %p683 = pneg %p319
        %p684 = scmp.lt.s32.totalorder %s39, 1
        %s685 = scalar_select %p684, %s39, 1
        %s686 = scalar_lea.vmem %s11, %s685
        %p687 = pneg %p348
        %p688 = pneg %p345
        %p689 = pneg %p369
        %p690 = pneg %p366
        %p691 = pneg %p390
        %p692 = pneg %p387
        %p693 = pneg %p416
        %p694 = pneg %p413
        %p695 = scmp.lt.s32.totalorder %s38, 1
        %s696 = scalar_select %p695, %s38, 1
        %s697 = scalar_lea.vmem %s14, %s696
        %p698 = scmp.lt.s32.totalorder %s39, 1
        %s699 = scalar_select %p698, %s39, 1
        %s700 = scalar_lea.vmem %s3, %s699
        %p701 = scmp.lt.s32.totalorder %s39, 1
        %s702 = scalar_select %p701, %s39, 1
        %s703 = scalar_lea.vmem %s4, %s702
        %p704 = scmp.lt.s32.totalorder %s39, 1
        %s705 = scalar_select %p704, %s39, 1
        %s706 = scalar_lea.vmem %s5, %s705
        %p707 = scmp.lt.s32.totalorder %s39, 1
        %s708 = scalar_select %p707, %s39, 1
        %s709 = scalar_lea.vmem %s7, %s708
        %p710 = scmp.lt.s32.totalorder %s39, 1
        %s711 = scalar_select %p710, %s39, 1
        %s712 = scalar_lea.vmem %s9, %s711
        %p713 = scmp.lt.s32.totalorder %s39, 1
        %s714 = scalar_select %p713, %s39, 1
        %s715 = scalar_lea.vmem %s10, %s714
        %p716 = scmp.lt.s32.totalorder %s39, 1
        %s717 = scalar_select %p716, %s39, 1
        %s718 = scalar_lea.vmem %s11, %s717
        %p719 = scmp.lt.s32.totalorder %s38, 1
        %s720 = scalar_select %p719, %s38, 1
        %s721 = scalar_lea.vmem %s14, %s720
        %p722 = scmp.eq.s32.totalorder %s39, 0
        // Predicated region
        $region97: #{rtransformer_forward.1} parent=75 // pred_check
          %p723 = pneg %p722
        $region98: #{rtransformer_forward.1} parent=75 // pred_check_branch
          %725 = sbr.rel (%p723) target = $region100
        $region99: #{rtransformer_forward.1} parent=75 // pred_region
          %v726 = vld [vmem:[%s588] sm:$0xff]
          %v727 = vld [vmem:[%s1] sm:$0xff]
          %v728 = vadd.f32 %v726, %v727
          %vm729 = vcmask 261120
          %730 = vst.msk [vmem:[#allocation2] sm:$0xff] %vm729, %v728
        $region100: #{rtransformer_forward.1} parent=75 // pred_fallthru
          _
        %v731 = vld [vmem:[#allocation2] sm:$0xff]
        %v732 = vld [vmem:[%s597] sm:$0xff]
        %v733 = vld [vmem:[%s597 + $0x8] sm:$0xff]
        %v734 = vld [vmem:[%s597 + $0x10] sm:$0xff]
        %v735 = vld [vmem:[%s597 + $0x18] sm:$0xff]
        %v736 = vld [vmem:[%s597 + $0x20] sm:$0xff]
        %v737 = vld [vmem:[%s597 + $0x28] sm:$0xff]
        %v738 = vld [vmem:[%s597 + $0x30] sm:$0xff]
        %v739 = vld [vmem:[%s597 + $0x38] sm:$0xff]
        %v740 = vld [vmem:[%s597 + $0x40] sm:$0xff]
        %v741 = vld [vmem:[%s597 + $0x48] sm:$0xff]
        %v742 = vld [vmem:[%s597 + $0x50] sm:$0xff]
        %v743 = vld [vmem:[%s597 + $0x58] sm:$0xff]
        %vm744 = vcmask 261120
        %v746 = vsel %vm744, %v731, 0
        %748 = vmatprep.subr.mxu0 0.0
        %749 = vmatpush1.msra.mxu0 0.0
        %750 = vmatprep.subr.mxu0 0.0
        %751 = vmatpush1.msra.mxu0 0.0
        %752 = vmatprep.subr.mxu0 0.0
        %753 = vmatpush1.msra.mxu0 0.0
        %754 = vmatprep.subr.mxu0 0.0
        %755 = vmatpush1.msra.mxu0 0.0
        %756 = vmatprep.subr.mxu0 0.0
        %757 = vmatpush1.msra.mxu0 0.0
        %758 = vmatprep.subr.mxu0 0.0
        %759 = vmatpush1.msra.mxu0 0.0
        %760 = vmatprep.subr.mxu0 0.0
        %761 = vmatpush1.msra.mxu0 0.0
        %762 = vmatprep.subr.mxu0 0.0
        %763 = vmatpush1.msra.mxu0 0.0
        %764 = vmatprep.subr.mxu0 0.0
        %765 = vmatpush1.msra.mxu0 0.0
        %766 = vmatprep.subr.mxu0 0.0
        %767 = vmatpush1.msra.mxu0 0.0
        %768 = vmatprep.subr.mxu0 0.0
        %769 = vmatpush1.msra.mxu0 0.0
        %770 = vmatprep.subr.mxu0 0.0
        %771 = vmatpush1.msra.mxu0 0.0
        %772 = vmatprep.subr.mxu0 %v742
        %773 = vmatpush1.msra.mxu0 %v741
        %774 = vmatprep.subr.mxu0 %v739
        %775 = vmatpush1.msra.mxu0 %v738
        %776 = vmatprep.subr.mxu0 %v736
        %777 = vmatpush1.msra.mxu0 %v735
        %778 = vmatprep.subr.mxu0 %v733
        %779 = vmatpush1.msra.mxu0 %v732
        %780 = vmatprep.subr.mxu0 0.0
        %781 = vmatpush2.msra.mxu0 0.0
        %782 = vmatprep.subr.mxu0 0.0
        %783 = vmatpush2.msra.mxu0 0.0
        %784 = vmatprep.subr.mxu0 0.0
        %785 = vmatpush2.msra.mxu0 0.0
        %786 = vmatprep.subr.mxu0 0.0
        %787 = vmatpush2.msra.mxu0 0.0
        %788 = vmatprep.subr.mxu0 0.0
        %789 = vmatpush2.msra.mxu0 0.0
        %790 = vmatprep.subr.mxu0 0.0
        %791 = vmatpush2.msra.mxu0 0.0
        %792 = vmatprep.subr.mxu0 0.0
        %793 = vmatpush2.msra.mxu0 0.0
        %794 = vmatprep.subr.mxu0 0.0
        %795 = vmatpush2.msra.mxu0 0.0
        %796 = vmatprep.subr.mxu0 0.0
        %797 = vmatpush2.msra.mxu0 0.0
        %798 = vmatprep.subr.mxu0 0.0
        %799 = vmatpush2.msra.mxu0 0.0
        %800 = vmatprep.subr.mxu0 0.0
        %801 = vmatpush2.msra.mxu0 0.0
        %802 = vmatprep.subr.mxu0 0.0
        %803 = vmatpush2.msra.mxu0 0.0
        %804 = vmatprep.subr.mxu0 0.0
        %805 = vmatpush2.msra.mxu0 0.0
        %806 = vmatprep.subr.mxu0 0.0
        %807 = vmatpush2.msra.mxu0 0.0
        %808 = vmatprep.subr.mxu0 0.0
        %809 = vmatpush2.msra.mxu0 0.0
        %810 = vmatprep.subr.mxu0 0.0
        %811 = vmatpush2.msra.mxu0 0.0
        %812 = vmatprep.mubr.f32.mxu0 0.0
        %813 = vmatmul.mubr.f32.gmra.mxu0 %v746
        %v814 = vpop.f32.mrf.mxu0
        %v815 = vadd.f32 0.0, %v814
        %v816 = vpop.f32.mrf.mxu0
        %v817 = vadd.f32 0.0, %v816
        %818 = vdwg.mxu0
        %819 = vmatprep.subr.mxu0 0.0
        %820 = vmatpush1.msra.mxu0 0.0
        %821 = vmatprep.subr.mxu0 0.0
        %822 = vmatpush1.msra.mxu0 0.0
        %823 = vmatprep.subr.mxu0 0.0
        %824 = vmatpush1.msra.mxu0 0.0
        %825 = vmatprep.subr.mxu0 0.0
        %826 = vmatpush1.msra.mxu0 0.0
        %827 = vmatprep.subr.mxu0 0.0
        %828 = vmatpush1.msra.mxu0 0.0
        %829 = vmatprep.subr.mxu0 0.0
        %830 = vmatpush1.msra.mxu0 0.0
        %831 = vmatprep.subr.mxu0 0.0
        %832 = vmatpush1.msra.mxu0 0.0
        %833 = vmatprep.subr.mxu0 0.0
        %834 = vmatpush1.msra.mxu0 0.0
        %835 = vmatprep.subr.mxu0 0.0
        %836 = vmatpush1.msra.mxu0 0.0
        %837 = vmatprep.subr.mxu0 0.0
        %838 = vmatpush1.msra.mxu0 0.0
        %839 = vmatprep.subr.mxu0 0.0
        %840 = vmatpush1.msra.mxu0 0.0
        %841 = vmatprep.subr.mxu0 0.0
        %842 = vmatpush1.msra.mxu0 0.0
        %843 = vmatprep.subr.mxu0 0.0
        %844 = vmatpush1.msra.mxu0 %v743
        %845 = vmatprep.subr.mxu0 0.0
        %846 = vmatpush1.msra.mxu0 %v740
        %847 = vmatprep.subr.mxu0 0.0
        %848 = vmatpush1.msra.mxu0 %v737
        %849 = vmatprep.subr.mxu0 0.0
        %850 = vmatpush1.msra.mxu0 %v734
        %851 = vmatprep.subr.mxu0 0.0
        %852 = vmatpush2.msra.mxu0 0.0
        %853 = vmatprep.subr.mxu0 0.0
        %854 = vmatpush2.msra.mxu0 0.0
        %855 = vmatprep.subr.mxu0 0.0
        %856 = vmatpush2.msra.mxu0 0.0
        %857 = vmatprep.subr.mxu0 0.0
        %858 = vmatpush2.msra.mxu0 0.0
        %859 = vmatprep.subr.mxu0 0.0
        %860 = vmatpush2.msra.mxu0 0.0
        %861 = vmatprep.subr.mxu0 0.0
        %862 = vmatpush2.msra.mxu0 0.0
        %863 = vmatprep.subr.mxu0 0.0
        %864 = vmatpush2.msra.mxu0 0.0
        %865 = vmatprep.subr.mxu0 0.0
        %866 = vmatpush2.msra.mxu0 0.0
        %867 = vmatprep.subr.mxu0 0.0
        %868 = vmatpush2.msra.mxu0 0.0
        %869 = vmatprep.subr.mxu0 0.0
        %870 = vmatpush2.msra.mxu0 0.0
        %871 = vmatprep.subr.mxu0 0.0
        %872 = vmatpush2.msra.mxu0 0.0
        %873 = vmatprep.subr.mxu0 0.0
        %874 = vmatpush2.msra.mxu0 0.0
        %875 = vmatprep.subr.mxu0 0.0
        %876 = vmatpush2.msra.mxu0 0.0
        %877 = vmatprep.subr.mxu0 0.0
        %878 = vmatpush2.msra.mxu0 0.0
        %879 = vmatprep.subr.mxu0 0.0
        %880 = vmatpush2.msra.mxu0 0.0
        %881 = vmatprep.subr.mxu0 0.0
        %882 = vmatpush2.msra.mxu0 0.0
        %883 = vmatprep.mubr.f32.mxu0 0.0
        %884 = vmatmul.mubr.f32.gmra.mxu0 %v746
        %v885 = vpop.f32.mrf.mxu0
        %v886 = vadd.f32 0.0, %v885
        %v887 = vpop.f32.mrf.mxu0
        %888 = vdwg.mxu0
        %890 = vrot.lane.b32.xlu0 %v815, 96
        %v891 = vpop.permute.xlu0 %890
        %892 = vrot.lane.b32.xlu0 %v815, 64
        %v893 = vpop.permute.xlu0 %892
        %894 = vrot.lane.b32.xlu0 %v815, 32
        %v895 = vpop.permute.xlu0 %894
        %897 = vrot.lane.b32.xlu0 %v817, 96
        %v898 = vpop.permute.xlu0 %897
        %899 = vrot.lane.b32.xlu0 %v817, 64
        %v900 = vpop.permute.xlu0 %899
        %901 = vrot.lane.b32.xlu0 %v817, 32
        %v902 = vpop.permute.xlu0 %901
        %904 = vrot.lane.b32.xlu0 %v886, 96
        %v905 = vpop.permute.xlu0 %904
        %907 = vrot.lane.b32.xlu0 %v886, 64
        %v908 = vpop.permute.xlu0 %907
        %910 = vrot.lane.b32.xlu0 %v886, 32
        %v911 = vpop.permute.xlu0 %910
        %v913 = vsel %vm744, %v815, 0
        %v915 = vsel %vm744, %v817, 0
        %917 = vmatprep.subr.mxu0 0.0
        %918 = vmatpush1.xpose.msra.mxu0 0.0
        %919 = vmatprep.subr.mxu0 0.0
        %920 = vmatpush1.xpose.msra.mxu0 0.0
        %921 = vmatprep.subr.mxu0 0.0
        %922 = vmatpush1.xpose.msra.mxu0 0.0
        %923 = vmatprep.subr.mxu0 0.0
        %924 = vmatpush1.xpose.msra.mxu0 0.0
        %925 = vmatprep.subr.mxu0 0.0
        %926 = vmatpush1.xpose.msra.mxu0 0.0
        %927 = vmatprep.subr.mxu0 0.0
        %928 = vmatpush1.xpose.msra.mxu0 0.0
        %929 = vmatprep.subr.mxu0 0.0
        %930 = vmatpush1.xpose.msra.mxu0 0.0
        %931 = vmatprep.subr.mxu0 0.0
        %932 = vmatpush1.xpose.msra.mxu0 0.0
        %933 = vmatprep.subr.mxu0 0.0
        %934 = vmatpush1.xpose.msra.mxu0 0.0
        %935 = vmatprep.subr.mxu0 0.0
        %936 = vmatpush1.xpose.msra.mxu0 0.0
        %937 = vmatprep.subr.mxu0 0.0
        %938 = vmatpush1.xpose.msra.mxu0 0.0
        %939 = vmatprep.subr.mxu0 0.0
        %940 = vmatpush1.xpose.msra.mxu0 0.0
        %941 = vmatprep.subr.mxu0 0.0
        %942 = vmatpush1.xpose.msra.mxu0 0.0
        %943 = vmatprep.subr.mxu0 0.0
        %944 = vmatpush1.xpose.msra.mxu0 0.0
        %945 = vmatprep.subr.mxu0 0.0
        %946 = vmatpush1.xpose.msra.mxu0 0.0
        %947 = vmatprep.subr.mxu0 0.0
        %948 = vmatpush1.xpose.msra.mxu0 %v915
        %949 = vmatprep.subr.mxu0 0.0
        %950 = vmatpush2.xpose.msra.mxu0 0.0
        %951 = vmatprep.subr.mxu0 0.0
        %952 = vmatpush2.xpose.msra.mxu0 0.0
        %953 = vmatprep.subr.mxu0 0.0
        %954 = vmatpush2.xpose.msra.mxu0 0.0
        %955 = vmatprep.subr.mxu0 0.0
        %956 = vmatpush2.xpose.msra.mxu0 0.0
        %957 = vmatprep.subr.mxu0 0.0
        %958 = vmatpush2.xpose.msra.mxu0 0.0
        %959 = vmatprep.subr.mxu0 0.0
        %960 = vmatpush2.xpose.msra.mxu0 0.0
        %961 = vmatprep.subr.mxu0 0.0
        %962 = vmatpush2.xpose.msra.mxu0 0.0
        %963 = vmatprep.subr.mxu0 0.0
        %964 = vmatpush2.xpose.msra.mxu0 0.0
        %965 = vmatprep.subr.mxu0 0.0
        %966 = vmatpush2.xpose.msra.mxu0 0.0
        %967 = vmatprep.subr.mxu0 0.0
        %968 = vmatpush2.xpose.msra.mxu0 0.0
        %969 = vmatprep.subr.mxu0 0.0
        %970 = vmatpush2.xpose.msra.mxu0 0.0
        %971 = vmatprep.subr.mxu0 0.0
        %972 = vmatpush2.xpose.msra.mxu0 0.0
        %973 = vmatprep.subr.mxu0 0.0
        %974 = vmatpush2.xpose.msra.mxu0 0.0
        %975 = vmatprep.subr.mxu0 0.0
        %976 = vmatpush2.xpose.msra.mxu0 0.0
        %977 = vmatprep.subr.mxu0 0.0
        %978 = vmatpush2.xpose.msra.mxu0 0.0
        %979 = vmatprep.subr.mxu0 0.0
        %980 = vmatpush2.xpose.msra.mxu0 0.0
        %981 = vmatprep.mubr.f32.mxu0 0.0
        %982 = vmatmul.mubr.f32.gmra.mxu0 %v913
        %v983 = vpop.f32.mrf.mxu0
        %v984 = vadd.f32 0.0, %v983
        %v985 = vpop.f32.mrf.mxu0
        %986 = vdwg.mxu0
        %v987 = vsel %vm744, %v891, 0
        %v989 = vsel %vm744, %v898, 0
        %991 = vmatprep.subr.mxu0 0.0
        %992 = vmatpush1.xpose.msra.mxu0 0.0
        %993 = vmatprep.subr.mxu0 0.0
        %994 = vmatpush1.xpose.msra.mxu0 0.0
        %995 = vmatprep.subr.mxu0 0.0
        %996 = vmatpush1.xpose.msra.mxu0 0.0
        %997 = vmatprep.subr.mxu0 0.0
        %998 = vmatpush1.xpose.msra.mxu0 0.0
        %999 = vmatprep.subr.mxu0 0.0
        %1000 = vmatpush1.xpose.msra.mxu0 0.0
        %1001 = vmatprep.subr.mxu0 0.0
        %1002 = vmatpush1.xpose.msra.mxu0 0.0
        %1003 = vmatprep.subr.mxu0 0.0
        %1004 = vmatpush1.xpose.msra.mxu0 0.0
        %1005 = vmatprep.subr.mxu0 0.0
        %1006 = vmatpush1.xpose.msra.mxu0 0.0
        %1007 = vmatprep.subr.mxu0 0.0
        %1008 = vmatpush1.xpose.msra.mxu0 0.0
        %1009 = vmatprep.subr.mxu0 0.0
        %1010 = vmatpush1.xpose.msra.mxu0 0.0
        %1011 = vmatprep.subr.mxu0 0.0
        %1012 = vmatpush1.xpose.msra.mxu0 0.0
        %1013 = vmatprep.subr.mxu0 0.0
        %1014 = vmatpush1.xpose.msra.mxu0 0.0
        %1015 = vmatprep.subr.mxu0 0.0
        %1016 = vmatpush1.xpose.msra.mxu0 0.0
        %1017 = vmatprep.subr.mxu0 0.0
        %1018 = vmatpush1.xpose.msra.mxu0 0.0
        %1019 = vmatprep.subr.mxu0 0.0
        %1020 = vmatpush1.xpose.msra.mxu0 0.0
        %1021 = vmatprep.subr.mxu0 0.0
        %1022 = vmatpush1.xpose.msra.mxu0 %v989
        %1023 = vmatprep.subr.mxu0 0.0
        %1024 = vmatpush2.xpose.msra.mxu0 0.0
        %1025 = vmatprep.subr.mxu0 0.0
        %1026 = vmatpush2.xpose.msra.mxu0 0.0
        %1027 = vmatprep.subr.mxu0 0.0
        %1028 = vmatpush2.xpose.msra.mxu0 0.0
        %1029 = vmatprep.subr.mxu0 0.0
        %1030 = vmatpush2.xpose.msra.mxu0 0.0
        %1031 = vmatprep.subr.mxu0 0.0
        %1032 = vmatpush2.xpose.msra.mxu0 0.0
        %1033 = vmatprep.subr.mxu0 0.0
        %1034 = vmatpush2.xpose.msra.mxu0 0.0
        %1035 = vmatprep.subr.mxu0 0.0
        %1036 = vmatpush2.xpose.msra.mxu0 0.0
        %1037 = vmatprep.subr.mxu0 0.0
        %1038 = vmatpush2.xpose.msra.mxu0 0.0
        %1039 = vmatprep.subr.mxu0 0.0
        %1040 = vmatpush2.xpose.msra.mxu0 0.0
        %1041 = vmatprep.subr.mxu0 0.0
        %1042 = vmatpush2.xpose.msra.mxu0 0.0
        %1043 = vmatprep.subr.mxu0 0.0
        %1044 = vmatpush2.xpose.msra.mxu0 0.0
        %1045 = vmatprep.subr.mxu0 0.0
        %1046 = vmatpush2.xpose.msra.mxu0 0.0
        %1047 = vmatprep.subr.mxu0 0.0
        %1048 = vmatpush2.xpose.msra.mxu0 0.0
        %1049 = vmatprep.subr.mxu0 0.0
        %1050 = vmatpush2.xpose.msra.mxu0 0.0
        %1051 = vmatprep.subr.mxu0 0.0
        %1052 = vmatpush2.xpose.msra.mxu0 0.0
        %1053 = vmatprep.subr.mxu0 0.0
        %1054 = vmatpush2.xpose.msra.mxu0 0.0
        %1055 = vmatprep.mubr.f32.mxu0 0.0
        %1056 = vmatmul.mubr.f32.gmra.mxu0 %v987
        %v1057 = vpop.f32.mrf.mxu0
        %v1058 = vadd.f32 0.0, %v1057
        %v1059 = vpop.f32.mrf.mxu0
        %1060 = vdwg.mxu0
        %v1061 = vsel %vm744, %v893, 0
        %v1063 = vsel %vm744, %v900, 0
        %1065 = vmatprep.subr.mxu0 0.0
        %1066 = vmatpush1.xpose.msra.mxu0 0.0
        %1067 = vmatprep.subr.mxu0 0.0
        %1068 = vmatpush1.xpose.msra.mxu0 0.0
        %1069 = vmatprep.subr.mxu0 0.0
        %1070 = vmatpush1.xpose.msra.mxu0 0.0
        %1071 = vmatprep.subr.mxu0 0.0
        %1072 = vmatpush1.xpose.msra.mxu0 0.0
        %1073 = vmatprep.subr.mxu0 0.0
        %1074 = vmatpush1.xpose.msra.mxu0 0.0
        %1075 = vmatprep.subr.mxu0 0.0
        %1076 = vmatpush1.xpose.msra.mxu0 0.0
        %1077 = vmatprep.subr.mxu0 0.0
        %1078 = vmatpush1.xpose.msra.mxu0 0.0
        %1079 = vmatprep.subr.mxu0 0.0
        %1080 = vmatpush1.xpose.msra.mxu0 0.0
        %1081 = vmatprep.subr.mxu0 0.0
        %1082 = vmatpush1.xpose.msra.mxu0 0.0
        %1083 = vmatprep.subr.mxu0 0.0
        %1084 = vmatpush1.xpose.msra.mxu0 0.0
        %1085 = vmatprep.subr.mxu0 0.0
        %1086 = vmatpush1.xpose.msra.mxu0 0.0
        %1087 = vmatprep.subr.mxu0 0.0
        %1088 = vmatpush1.xpose.msra.mxu0 0.0
        %1089 = vmatprep.subr.mxu0 0.0
        %1090 = vmatpush1.xpose.msra.mxu0 0.0
        %1091 = vmatprep.subr.mxu0 0.0
        %1092 = vmatpush1.xpose.msra.mxu0 0.0
        %1093 = vmatprep.subr.mxu0 0.0
        %1094 = vmatpush1.xpose.msra.mxu0 0.0
        %1095 = vmatprep.subr.mxu0 0.0
        %1096 = vmatpush1.xpose.msra.mxu0 %v1063
        %1097 = vmatprep.subr.mxu0 0.0
        %1098 = vmatpush2.xpose.msra.mxu0 0.0
        %1099 = vmatprep.subr.mxu0 0.0
        %1100 = vmatpush2.xpose.msra.mxu0 0.0
        %1101 = vmatprep.subr.mxu0 0.0
        %1102 = vmatpush2.xpose.msra.mxu0 0.0
        %1103 = vmatprep.subr.mxu0 0.0
        %1104 = vmatpush2.xpose.msra.mxu0 0.0
        %1105 = vmatprep.subr.mxu0 0.0
        %1106 = vmatpush2.xpose.msra.mxu0 0.0
        %1107 = vmatprep.subr.mxu0 0.0
        %1108 = vmatpush2.xpose.msra.mxu0 0.0
        %1109 = vmatprep.subr.mxu0 0.0
        %1110 = vmatpush2.xpose.msra.mxu0 0.0
        %1111 = vmatprep.subr.mxu0 0.0
        %1112 = vmatpush2.xpose.msra.mxu0 0.0
        %1113 = vmatprep.subr.mxu0 0.0
        %1114 = vmatpush2.xpose.msra.mxu0 0.0
        %1115 = vmatprep.subr.mxu0 0.0
        %1116 = vmatpush2.xpose.msra.mxu0 0.0
        %1117 = vmatprep.subr.mxu0 0.0
        %1118 = vmatpush2.xpose.msra.mxu0 0.0
        %1119 = vmatprep.subr.mxu0 0.0
        %1120 = vmatpush2.xpose.msra.mxu0 0.0
        %1121 = vmatprep.subr.mxu0 0.0
        %1122 = vmatpush2.xpose.msra.mxu0 0.0
        %1123 = vmatprep.subr.mxu0 0.0
        %1124 = vmatpush2.xpose.msra.mxu0 0.0
        %1125 = vmatprep.subr.mxu0 0.0
        %1126 = vmatpush2.xpose.msra.mxu0 0.0
        %1127 = vmatprep.subr.mxu0 0.0
        %1128 = vmatpush2.xpose.msra.mxu0 0.0
        %1129 = vmatprep.mubr.f32.mxu0 0.0
        %1130 = vmatmul.mubr.f32.gmra.mxu0 %v1061
        %v1131 = vpop.f32.mrf.mxu0
        %v1132 = vadd.f32 0.0, %v1131
        %v1133 = vpop.f32.mrf.mxu0
        %1134 = vdwg.mxu0
        %v1135 = vsel %vm744, %v895, 0
        %v1137 = vsel %vm744, %v902, 0
        %1139 = vmatprep.subr.mxu0 0.0
        %1140 = vmatpush1.xpose.msra.mxu0 0.0
        %1141 = vmatprep.subr.mxu0 0.0
        %1142 = vmatpush1.xpose.msra.mxu0 0.0
        %1143 = vmatprep.subr.mxu0 0.0
        %1144 = vmatpush1.xpose.msra.mxu0 0.0
        %1145 = vmatprep.subr.mxu0 0.0
        %1146 = vmatpush1.xpose.msra.mxu0 0.0
        %1147 = vmatprep.subr.mxu0 0.0
        %1148 = vmatpush1.xpose.msra.mxu0 0.0
        %1149 = vmatprep.subr.mxu0 0.0
        %1150 = vmatpush1.xpose.msra.mxu0 0.0
        %1151 = vmatprep.subr.mxu0 0.0
        %1152 = vmatpush1.xpose.msra.mxu0 0.0
        %1153 = vmatprep.subr.mxu0 0.0
        %1154 = vmatpush1.xpose.msra.mxu0 0.0
        %1155 = vmatprep.subr.mxu0 0.0
        %1156 = vmatpush1.xpose.msra.mxu0 0.0
        %1157 = vmatprep.subr.mxu0 0.0
        %1158 = vmatpush1.xpose.msra.mxu0 0.0
        %1159 = vmatprep.subr.mxu0 0.0
        %1160 = vmatpush1.xpose.msra.mxu0 0.0
        %1161 = vmatprep.subr.mxu0 0.0
        %1162 = vmatpush1.xpose.msra.mxu0 0.0
        %1163 = vmatprep.subr.mxu0 0.0
        %1164 = vmatpush1.xpose.msra.mxu0 0.0
        %1165 = vmatprep.subr.mxu0 0.0
        %1166 = vmatpush1.xpose.msra.mxu0 0.0
        %1167 = vmatprep.subr.mxu0 0.0
        %1168 = vmatpush1.xpose.msra.mxu0 0.0
        %1169 = vmatprep.subr.mxu0 0.0
        %1170 = vmatpush1.xpose.msra.mxu0 %v1137
        %1171 = vmatprep.subr.mxu0 0.0
        %1172 = vmatpush2.xpose.msra.mxu0 0.0
        %1173 = vmatprep.subr.mxu0 0.0
        %1174 = vmatpush2.xpose.msra.mxu0 0.0
        %1175 = vmatprep.subr.mxu0 0.0
        %1176 = vmatpush2.xpose.msra.mxu0 0.0
        %1177 = vmatprep.subr.mxu0 0.0
        %1178 = vmatpush2.xpose.msra.mxu0 0.0
        %1179 = vmatprep.subr.mxu0 0.0
        %1180 = vmatpush2.xpose.msra.mxu0 0.0
        %1181 = vmatprep.subr.mxu0 0.0
        %1182 = vmatpush2.xpose.msra.mxu0 0.0
        %1183 = vmatprep.subr.mxu0 0.0
        %1184 = vmatpush2.xpose.msra.mxu0 0.0
        %1185 = vmatprep.subr.mxu0 0.0
        %1186 = vmatpush2.xpose.msra.mxu0 0.0
        %1187 = vmatprep.subr.mxu0 0.0
        %1188 = vmatpush2.xpose.msra.mxu0 0.0
        %1189 = vmatprep.subr.mxu0 0.0
        %1190 = vmatpush2.xpose.msra.mxu0 0.0
        %1191 = vmatprep.subr.mxu0 0.0
        %1192 = vmatpush2.xpose.msra.mxu0 0.0
        %1193 = vmatprep.subr.mxu0 0.0
        %1194 = vmatpush2.xpose.msra.mxu0 0.0
        %1195 = vmatprep.subr.mxu0 0.0
        %1196 = vmatpush2.xpose.msra.mxu0 0.0
        %1197 = vmatprep.subr.mxu0 0.0
        %1198 = vmatpush2.xpose.msra.mxu0 0.0
        %1199 = vmatprep.subr.mxu0 0.0
        %1200 = vmatpush2.xpose.msra.mxu0 0.0
        %1201 = vmatprep.subr.mxu0 0.0
        %1202 = vmatpush2.xpose.msra.mxu0 0.0
        %1203 = vmatprep.mubr.f32.mxu0 0.0
        %1204 = vmatmul.mubr.f32.gmra.mxu0 %v1135
        %v1205 = vpop.f32.mrf.mxu0
        %v1206 = vadd.f32 0.0, %v1205
        %v1207 = vpop.f32.mrf.mxu0
        %1208 = vdwg.mxu0
        %vm1209 = vcmask 64512
        %v1210 = vsel %vm1209, %v984, -inf
        %1211 = vmax.xlane.f32.xlu0 %v1210
        %v1212 = vpop.xlane.xlu0 %1211
        %v1213 = vsel %vm1209, %v1058, -inf
        %1214 = vmax.xlane.f32.xlu0 %v1213
        %v1215 = vpop.xlane.xlu0 %1214
        %v1216 = vsel %vm1209, %v1132, -inf
        %1217 = vmax.xlane.f32.xlu0 %v1216
        %v1218 = vpop.xlane.xlu0 %1217
        %v1219 = vsel %vm1209, %v1206, -inf
        %1220 = vmax.xlane.f32.xlu0 %v1219
        %v1221 = vpop.xlane.xlu0 %1220
        %v1222 = vsub.f32 %v984, %v1212
        %v1223 = vsub.f32 %v1058, %v1215
        %v1224 = vsub.f32 %v1132, %v1218
        %v1225 = vsub.f32 %v1206, %v1221
        %v1226 = vmul.f32 %v1222, 1.442695
        %v1227 = vpow.pop %v1226
        %v1228 = vmul.f32 %v1223, 1.442695
        %v1229 = vpow.pop %v1228
        %v1230 = vmul.f32 %v1224, 1.442695
        %v1231 = vpow.pop %v1230
        %v1232 = vmul.f32 %v1225, 1.442695
        %v1233 = vpow.pop %v1232
        %v1234 = vsel %vm1209, %v1227, 0.0
        %1235 = vadd.xlane.f32.xlu0 %v1234
        %v1236 = vpop.xlane.xlu0 %1235
        %v1237 = vsel %vm1209, %v1229, 0.0
        %1238 = vadd.xlane.f32.xlu0 %v1237
        %v1239 = vpop.xlane.xlu0 %1238
        %v1240 = vsel %vm1209, %v1231, 0.0
        %1241 = vadd.xlane.f32.xlu0 %v1240
        %v1242 = vpop.xlane.xlu0 %1241
        %v1243 = vsel %vm1209, %v1233, 0.0
        %1244 = vadd.xlane.f32.xlu0 %v1243
        %v1245 = vpop.xlane.xlu0 %1244
        %v1246 = vrcp.pop %v1236
        %v1247 = vrcp.pop %v1239
        %v1248 = vrcp.pop %v1242
        %v1249 = vrcp.pop %v1245
        %v1250 = vmul.f32 %v1227, %v1246
        %v1251 = vmul.f32 %v1229, %v1247
        %v1252 = vmul.f32 %v1231, %v1248
        %v1253 = vmul.f32 %v1233, %v1249
        %v1255 = vsel %vm1209, %v1250, 0
        %1257 = vmatprep.subr.mxu0 0.0
        %1258 = vmatpush1.msra.mxu0 0.0
        %1259 = vmatprep.subr.mxu0 0.0
        %1260 = vmatpush1.msra.mxu0 0.0
        %1261 = vmatprep.subr.mxu0 0.0
        %1262 = vmatpush1.msra.mxu0 0.0
        %1263 = vmatprep.subr.mxu0 0.0
        %1264 = vmatpush1.msra.mxu0 0.0
        %1265 = vmatprep.subr.mxu0 0.0
        %1266 = vmatpush1.msra.mxu0 0.0
        %1267 = vmatprep.subr.mxu0 0.0
        %1268 = vmatpush1.msra.mxu0 0.0
        %1269 = vmatprep.subr.mxu0 0.0
        %1270 = vmatpush1.msra.mxu0 0.0
        %1271 = vmatprep.subr.mxu0 0.0
        %1272 = vmatpush1.msra.mxu0 0.0
        %1273 = vmatprep.subr.mxu0 0.0
        %1274 = vmatpush1.msra.mxu0 0.0
        %1275 = vmatprep.subr.mxu0 0.0
        %1276 = vmatpush1.msra.mxu0 0.0
        %1277 = vmatprep.subr.mxu0 0.0
        %1278 = vmatpush1.msra.mxu0 0.0
        %1279 = vmatprep.subr.mxu0 0.0
        %1280 = vmatpush1.msra.mxu0 0.0
        %1281 = vmatprep.subr.mxu0 0.0
        %1282 = vmatpush1.msra.mxu0 0.0
        %1283 = vmatprep.subr.mxu0 0.0
        %1284 = vmatpush1.msra.mxu0 0.0
        %1285 = vmatprep.subr.mxu0 0.0
        %1286 = vmatpush1.msra.mxu0 0.0
        %1287 = vmatprep.subr.mxu0 0.0
        %1288 = vmatpush1.msra.mxu0 %v886
        %1289 = vmatprep.subr.mxu0 0.0
        %1290 = vmatpush2.msra.mxu0 0.0
        %1291 = vmatprep.subr.mxu0 0.0
        %1292 = vmatpush2.msra.mxu0 0.0
        %1293 = vmatprep.subr.mxu0 0.0
        %1294 = vmatpush2.msra.mxu0 0.0
        %1295 = vmatprep.subr.mxu0 0.0
        %1296 = vmatpush2.msra.mxu0 0.0
        %1297 = vmatprep.subr.mxu0 0.0
        %1298 = vmatpush2.msra.mxu0 0.0
        %1299 = vmatprep.subr.mxu0 0.0
        %1300 = vmatpush2.msra.mxu0 0.0
        %1301 = vmatprep.subr.mxu0 0.0
        %1302 = vmatpush2.msra.mxu0 0.0
        %1303 = vmatprep.subr.mxu0 0.0
        %1304 = vmatpush2.msra.mxu0 0.0
        %1305 = vmatprep.subr.mxu0 0.0
        %1306 = vmatpush2.msra.mxu0 0.0
        %1307 = vmatprep.subr.mxu0 0.0
        %1308 = vmatpush2.msra.mxu0 0.0
        %1309 = vmatprep.subr.mxu0 0.0
        %1310 = vmatpush2.msra.mxu0 0.0
        %1311 = vmatprep.subr.mxu0 0.0
        %1312 = vmatpush2.msra.mxu0 0.0
        %1313 = vmatprep.subr.mxu0 0.0
        %1314 = vmatpush2.msra.mxu0 0.0
        %1315 = vmatprep.subr.mxu0 0.0
        %1316 = vmatpush2.msra.mxu0 0.0
        %1317 = vmatprep.subr.mxu0 0.0
        %1318 = vmatpush2.msra.mxu0 0.0
        %1319 = vmatprep.subr.mxu0 0.0
        %1320 = vmatpush2.msra.mxu0 0.0
        %1321 = vmatprep.mubr.f32.mxu0 0.0
        %1322 = vmatmul.mubr.f32.gmra.mxu0 %v1255
        %v1323 = vpop.f32.mrf.mxu0
        %v1324 = vadd.f32 0.0, %v1323
        %v1325 = vpop.f32.mrf.mxu0
        %1326 = vdwg.mxu0
        %v1328 = vsel %vm1209, %v1251, 0
        %1330 = vmatprep.subr.mxu0 0.0
        %1331 = vmatpush1.msra.mxu0 0.0
        %1332 = vmatprep.subr.mxu0 0.0
        %1333 = vmatpush1.msra.mxu0 0.0
        %1334 = vmatprep.subr.mxu0 0.0
        %1335 = vmatpush1.msra.mxu0 0.0
        %1336 = vmatprep.subr.mxu0 0.0
        %1337 = vmatpush1.msra.mxu0 0.0
        %1338 = vmatprep.subr.mxu0 0.0
        %1339 = vmatpush1.msra.mxu0 0.0
        %1340 = vmatprep.subr.mxu0 0.0
        %1341 = vmatpush1.msra.mxu0 0.0
        %1342 = vmatprep.subr.mxu0 0.0
        %1343 = vmatpush1.msra.mxu0 0.0
        %1344 = vmatprep.subr.mxu0 0.0
        %1345 = vmatpush1.msra.mxu0 0.0
        %1346 = vmatprep.subr.mxu0 0.0
        %1347 = vmatpush1.msra.mxu0 0.0
        %1348 = vmatprep.subr.mxu0 0.0
        %1349 = vmatpush1.msra.mxu0 0.0
        %1350 = vmatprep.subr.mxu0 0.0
        %1351 = vmatpush1.msra.mxu0 0.0
        %1352 = vmatprep.subr.mxu0 0.0
        %1353 = vmatpush1.msra.mxu0 0.0
        %1354 = vmatprep.subr.mxu0 0.0
        %1355 = vmatpush1.msra.mxu0 0.0
        %1356 = vmatprep.subr.mxu0 0.0
        %1357 = vmatpush1.msra.mxu0 0.0
        %1358 = vmatprep.subr.mxu0 0.0
        %1359 = vmatpush1.msra.mxu0 0.0
        %1360 = vmatprep.subr.mxu0 0.0
        %1361 = vmatpush1.msra.mxu0 %v905
        %1362 = vmatprep.subr.mxu0 0.0
        %1363 = vmatpush2.msra.mxu0 0.0
        %1364 = vmatprep.subr.mxu0 0.0
        %1365 = vmatpush2.msra.mxu0 0.0
        %1366 = vmatprep.subr.mxu0 0.0
        %1367 = vmatpush2.msra.mxu0 0.0
        %1368 = vmatprep.subr.mxu0 0.0
        %1369 = vmatpush2.msra.mxu0 0.0
        %1370 = vmatprep.subr.mxu0 0.0
        %1371 = vmatpush2.msra.mxu0 0.0
        %1372 = vmatprep.subr.mxu0 0.0
        %1373 = vmatpush2.msra.mxu0 0.0
        %1374 = vmatprep.subr.mxu0 0.0
        %1375 = vmatpush2.msra.mxu0 0.0
        %1376 = vmatprep.subr.mxu0 0.0
        %1377 = vmatpush2.msra.mxu0 0.0
        %1378 = vmatprep.subr.mxu0 0.0
        %1379 = vmatpush2.msra.mxu0 0.0
        %1380 = vmatprep.subr.mxu0 0.0
        %1381 = vmatpush2.msra.mxu0 0.0
        %1382 = vmatprep.subr.mxu0 0.0
        %1383 = vmatpush2.msra.mxu0 0.0
        %1384 = vmatprep.subr.mxu0 0.0
        %1385 = vmatpush2.msra.mxu0 0.0
        %1386 = vmatprep.subr.mxu0 0.0
        %1387 = vmatpush2.msra.mxu0 0.0
        %1388 = vmatprep.subr.mxu0 0.0
        %1389 = vmatpush2.msra.mxu0 0.0
        %1390 = vmatprep.subr.mxu0 0.0
        %1391 = vmatpush2.msra.mxu0 0.0
        %1392 = vmatprep.subr.mxu0 0.0
        %1393 = vmatpush2.msra.mxu0 0.0
        %1394 = vmatprep.mubr.f32.mxu0 0.0
        %1395 = vmatmul.mubr.f32.gmra.mxu0 %v1328
        %v1396 = vpop.f32.mrf.mxu0
        %v1397 = vadd.f32 0.0, %v1396
        %v1398 = vpop.f32.mrf.mxu0
        %1399 = vdwg.mxu0
        %v1401 = vsel %vm1209, %v1252, 0
        %1403 = vmatprep.subr.mxu0 0.0
        %1404 = vmatpush1.msra.mxu0 0.0
        %1405 = vmatprep.subr.mxu0 0.0
        %1406 = vmatpush1.msra.mxu0 0.0
        %1407 = vmatprep.subr.mxu0 0.0
        %1408 = vmatpush1.msra.mxu0 0.0
        %1409 = vmatprep.subr.mxu0 0.0
        %1410 = vmatpush1.msra.mxu0 0.0
        %1411 = vmatprep.subr.mxu0 0.0
        %1412 = vmatpush1.msra.mxu0 0.0
        %1413 = vmatprep.subr.mxu0 0.0
        %1414 = vmatpush1.msra.mxu0 0.0
        %1415 = vmatprep.subr.mxu0 0.0
        %1416 = vmatpush1.msra.mxu0 0.0
        %1417 = vmatprep.subr.mxu0 0.0
        %1418 = vmatpush1.msra.mxu0 0.0
        %1419 = vmatprep.subr.mxu0 0.0
        %1420 = vmatpush1.msra.mxu0 0.0
        %1421 = vmatprep.subr.mxu0 0.0
        %1422 = vmatpush1.msra.mxu0 0.0
        %1423 = vmatprep.subr.mxu0 0.0
        %1424 = vmatpush1.msra.mxu0 0.0
        %1425 = vmatprep.subr.mxu0 0.0
        %1426 = vmatpush1.msra.mxu0 0.0
        %1427 = vmatprep.subr.mxu0 0.0
        %1428 = vmatpush1.msra.mxu0 0.0
        %1429 = vmatprep.subr.mxu0 0.0
        %1430 = vmatpush1.msra.mxu0 0.0
        %1431 = vmatprep.subr.mxu0 0.0
        %1432 = vmatpush1.msra.mxu0 0.0
        %1433 = vmatprep.subr.mxu0 0.0
        %1434 = vmatpush1.msra.mxu0 %v908
        %1435 = vmatprep.subr.mxu0 0.0
        %1436 = vmatpush2.msra.mxu0 0.0
        %1437 = vmatprep.subr.mxu0 0.0
        %1438 = vmatpush2.msra.mxu0 0.0
        %1439 = vmatprep.subr.mxu0 0.0
        %1440 = vmatpush2.msra.mxu0 0.0
        %1441 = vmatprep.subr.mxu0 0.0
        %1442 = vmatpush2.msra.mxu0 0.0
        %1443 = vmatprep.subr.mxu0 0.0
        %1444 = vmatpush2.msra.mxu0 0.0
        %1445 = vmatprep.subr.mxu0 0.0
        %1446 = vmatpush2.msra.mxu0 0.0
        %1447 = vmatprep.subr.mxu0 0.0
        %1448 = vmatpush2.msra.mxu0 0.0
        %1449 = vmatprep.subr.mxu0 0.0
        %1450 = vmatpush2.msra.mxu0 0.0
        %1451 = vmatprep.subr.mxu0 0.0
        %1452 = vmatpush2.msra.mxu0 0.0
        %1453 = vmatprep.subr.mxu0 0.0
        %1454 = vmatpush2.msra.mxu0 0.0
        %1455 = vmatprep.subr.mxu0 0.0
        %1456 = vmatpush2.msra.mxu0 0.0
        %1457 = vmatprep.subr.mxu0 0.0
        %1458 = vmatpush2.msra.mxu0 0.0
        %1459 = vmatprep.subr.mxu0 0.0
        %1460 = vmatpush2.msra.mxu0 0.0
        %1461 = vmatprep.subr.mxu0 0.0
        %1462 = vmatpush2.msra.mxu0 0.0
        %1463 = vmatprep.subr.mxu0 0.0
        %1464 = vmatpush2.msra.mxu0 0.0
        %1465 = vmatprep.subr.mxu0 0.0
        %1466 = vmatpush2.msra.mxu0 0.0
        %1467 = vmatprep.mubr.f32.mxu0 0.0
        %1468 = vmatmul.mubr.f32.gmra.mxu0 %v1401
        %v1469 = vpop.f32.mrf.mxu0
        %v1470 = vadd.f32 0.0, %v1469
        %v1471 = vpop.f32.mrf.mxu0
        %1472 = vdwg.mxu0
        %v1474 = vsel %vm1209, %v1253, 0
        %1476 = vmatprep.subr.mxu0 0.0
        %1477 = vmatpush1.msra.mxu0 0.0
        %1478 = vmatprep.subr.mxu0 0.0
        %1479 = vmatpush1.msra.mxu0 0.0
        %1480 = vmatprep.subr.mxu0 0.0
        %1481 = vmatpush1.msra.mxu0 0.0
        %1482 = vmatprep.subr.mxu0 0.0
        %1483 = vmatpush1.msra.mxu0 0.0
        %1484 = vmatprep.subr.mxu0 0.0
        %1485 = vmatpush1.msra.mxu0 0.0
        %1486 = vmatprep.subr.mxu0 0.0
        %1487 = vmatpush1.msra.mxu0 0.0
        %1488 = vmatprep.subr.mxu0 0.0
        %1489 = vmatpush1.msra.mxu0 0.0
        %1490 = vmatprep.subr.mxu0 0.0
        %1491 = vmatpush1.msra.mxu0 0.0
        %1492 = vmatprep.subr.mxu0 0.0
        %1493 = vmatpush1.msra.mxu0 0.0
        %1494 = vmatprep.subr.mxu0 0.0
        %1495 = vmatpush1.msra.mxu0 0.0
        %1496 = vmatprep.subr.mxu0 0.0
        %1497 = vmatpush1.msra.mxu0 0.0
        %1498 = vmatprep.subr.mxu0 0.0
        %1499 = vmatpush1.msra.mxu0 0.0
        %1500 = vmatprep.subr.mxu0 0.0
        %1501 = vmatpush1.msra.mxu0 0.0
        %1502 = vmatprep.subr.mxu0 0.0
        %1503 = vmatpush1.msra.mxu0 0.0
        %1504 = vmatprep.subr.mxu0 0.0
        %1505 = vmatpush1.msra.mxu0 0.0
        %1506 = vmatprep.subr.mxu0 0.0
        %1507 = vmatpush1.msra.mxu0 %v911
        %1508 = vmatprep.subr.mxu0 0.0
        %1509 = vmatpush2.msra.mxu0 0.0
        %1510 = vmatprep.subr.mxu0 0.0
        %1511 = vmatpush2.msra.mxu0 0.0
        %1512 = vmatprep.subr.mxu0 0.0
        %1513 = vmatpush2.msra.mxu0 0.0
        %1514 = vmatprep.subr.mxu0 0.0
        %1515 = vmatpush2.msra.mxu0 0.0
        %1516 = vmatprep.subr.mxu0 0.0
        %1517 = vmatpush2.msra.mxu0 0.0
        %1518 = vmatprep.subr.mxu0 0.0
        %1519 = vmatpush2.msra.mxu0 0.0
        %1520 = vmatprep.subr.mxu0 0.0
        %1521 = vmatpush2.msra.mxu0 0.0
        %1522 = vmatprep.subr.mxu0 0.0
        %1523 = vmatpush2.msra.mxu0 0.0
        %1524 = vmatprep.subr.mxu0 0.0
        %1525 = vmatpush2.msra.mxu0 0.0
        %1526 = vmatprep.subr.mxu0 0.0
        %1527 = vmatpush2.msra.mxu0 0.0
        %1528 = vmatprep.subr.mxu0 0.0
        %1529 = vmatpush2.msra.mxu0 0.0
        %1530 = vmatprep.subr.mxu0 0.0
        %1531 = vmatpush2.msra.mxu0 0.0
        %1532 = vmatprep.subr.mxu0 0.0
        %1533 = vmatpush2.msra.mxu0 0.0
        %1534 = vmatprep.subr.mxu0 0.0
        %1535 = vmatpush2.msra.mxu0 0.0
        %1536 = vmatprep.subr.mxu0 0.0
        %1537 = vmatpush2.msra.mxu0 0.0
        %1538 = vmatprep.subr.mxu0 0.0
        %1539 = vmatpush2.msra.mxu0 0.0
        %1540 = vmatprep.mubr.f32.mxu0 0.0
        %1541 = vmatmul.mubr.f32.gmra.mxu0 %v1474
        %v1542 = vpop.f32.mrf.mxu0
        %v1543 = vadd.f32 0.0, %v1542
        %v1544 = vpop.f32.mrf.mxu0
        %1545 = vdwg.mxu0
        %v1546 = vsel %vm744, %v1324, 0.0
        %v1547 = vsel %vm744, %v1397, 0.0
        %v1548 = vadd.f32 %v1546, %v1547
        %v1549 = vsel %vm744, %v1470, 0.0
        %v1550 = vadd.f32 %v1548, %v1549
        %v1551 = vsel %vm744, %v1543, 0.0
        %v1552 = vadd.f32 %v1550, %v1551
        %v1553 = vld [vmem:[%s700] sm:$0x1]
        %v1555 = vlaneseq
        %v1556 = vshrl.u32 %v1555, 7
        %v1557 = vsub.s32 0, %v1556
        %v1558 = vrot.slane %v1553, %v1557
        %v1560 = vadd.f32 %v1552, %v1558
        %v1561 = vadd.f32 %v1560, %v731
        %v1562 = vld [vmem:[%s703] sm:$0x1]
        %v1563 = vld [vmem:[%s706] sm:$0x1]
        %v1564 = vsel %vm744, %v1561, 0.0
        %1565 = vadd.xlane.f32.xlu0 %v1564
        %v1566 = vpop.xlane.xlu0 %1565
        %v1567 = vrcp.pop 32.0
        %v1568 = vmul.f32 %v1566, %v1567
        %v1569 = vsub.f32 %v1561, %v1568
        %v1570 = vmul.f32 %v1569, %v1569
        %v1571 = vsel %vm744, %v1570, 0.0
        %1572 = vadd.xlane.f32.xlu0 %v1571
        %v1573 = vpop.xlane.xlu0 %1572
        %v1574 = vmul.f32 %v1573, %v1567
        %v1575 = vadd.f32 %v1574, 1e-05
        %v1576 = vrsqrt.pop %v1575
        %v1577 = vmul.f32 %v1569, %v1576
        %v1579 = vlaneseq
        %v1580 = vshrl.u32 %v1579, 7
        %v1581 = vsub.s32 0, %v1580
        %v1582 = vrot.slane %v1562, %v1581
        %v1584 = vmul.f32 %v1577, %v1582
        %v1586 = vlaneseq
        %v1587 = vshrl.u32 %v1586, 7
        %v1588 = vsub.s32 0, %v1587
        %v1589 = vrot.slane %v1563, %v1588
        %v1591 = vadd.f32 %v1584, %v1589
        %v1592 = vld [vmem:[%s606] sm:$0xff]
        %v1593 = vld [vmem:[%s606 + $0x8] sm:$0xff]
        %v1594 = vld [vmem:[%s606 + $0x10] sm:$0xff]
        %v1595 = vld [vmem:[%s606 + $0x18] sm:$0xff]
        %v1596 = vld [vmem:[%s709] sm:$0x1]
        %v1598 = vlaneseq
        %v1599 = vshrl.u32 %v1598, 7
        %v1600 = vsub.s32 0, %v1599
        %v1601 = vrot.slane %v1596, %v1600
        %v1604 = vsel %vm744, %v1591, 0
        %1606 = vmatprep.subr.mxu0 0.0
        %1607 = vmatpush1.msra.mxu0 0.0
        %1608 = vmatprep.subr.mxu0 0.0
        %1609 = vmatpush1.msra.mxu0 0.0
        %1610 = vmatprep.subr.mxu0 0.0
        %1611 = vmatpush1.msra.mxu0 0.0
        %1612 = vmatprep.subr.mxu0 0.0
        %1613 = vmatpush1.msra.mxu0 0.0
        %1614 = vmatprep.subr.mxu0 0.0
        %1615 = vmatpush1.msra.mxu0 0.0
        %1616 = vmatprep.subr.mxu0 0.0
        %1617 = vmatpush1.msra.mxu0 0.0
        %1618 = vmatprep.subr.mxu0 0.0
        %1619 = vmatpush1.msra.mxu0 0.0
        %1620 = vmatprep.subr.mxu0 0.0
        %1621 = vmatpush1.msra.mxu0 0.0
        %1622 = vmatprep.subr.mxu0 0.0
        %1623 = vmatpush1.msra.mxu0 0.0
        %1624 = vmatprep.subr.mxu0 0.0
        %1625 = vmatpush1.msra.mxu0 0.0
        %1626 = vmatprep.subr.mxu0 0.0
        %1627 = vmatpush1.msra.mxu0 0.0
        %1628 = vmatprep.subr.mxu0 0.0
        %1629 = vmatpush1.msra.mxu0 0.0
        %1630 = vmatprep.subr.mxu0 0.0
        %1631 = vmatpush1.msra.mxu0 %v1595
        %1632 = vmatprep.subr.mxu0 0.0
        %1633 = vmatpush1.msra.mxu0 %v1594
        %1634 = vmatprep.subr.mxu0 0.0
        %1635 = vmatpush1.msra.mxu0 %v1593
        %1636 = vmatprep.subr.mxu0 0.0
        %1637 = vmatpush1.msra.mxu0 %v1592
        %1638 = vmatprep.subr.mxu0 0.0
        %1639 = vmatpush2.msra.mxu0 0.0
        %1640 = vmatprep.subr.mxu0 0.0
        %1641 = vmatpush2.msra.mxu0 0.0
        %1642 = vmatprep.subr.mxu0 0.0
        %1643 = vmatpush2.msra.mxu0 0.0
        %1644 = vmatprep.subr.mxu0 0.0
        %1645 = vmatpush2.msra.mxu0 0.0
        %1646 = vmatprep.subr.mxu0 0.0
        %1647 = vmatpush2.msra.mxu0 0.0
        %1648 = vmatprep.subr.mxu0 0.0
        %1649 = vmatpush2.msra.mxu0 0.0
        %1650 = vmatprep.subr.mxu0 0.0
        %1651 = vmatpush2.msra.mxu0 0.0
        %1652 = vmatprep.subr.mxu0 0.0
        %1653 = vmatpush2.msra.mxu0 0.0
        %1654 = vmatprep.subr.mxu0 0.0
        %1655 = vmatpush2.msra.mxu0 0.0
        %1656 = vmatprep.subr.mxu0 0.0
        %1657 = vmatpush2.msra.mxu0 0.0
        %1658 = vmatprep.subr.mxu0 0.0
        %1659 = vmatpush2.msra.mxu0 0.0
        %1660 = vmatprep.subr.mxu0 0.0
        %1661 = vmatpush2.msra.mxu0 0.0
        %1662 = vmatprep.subr.mxu0 0.0
        %1663 = vmatpush2.msra.mxu0 0.0
        %1664 = vmatprep.subr.mxu0 0.0
        %1665 = vmatpush2.msra.mxu0 0.0
        %1666 = vmatprep.subr.mxu0 0.0
        %1667 = vmatpush2.msra.mxu0 0.0
        %1668 = vmatprep.subr.mxu0 0.0
        %1669 = vmatpush2.msra.mxu0 0.0
        %1670 = vmatprep.mubr.f32.mxu0 0.0
        %1671 = vmatmul.mubr.f32.gmra.mxu0 %v1604
        %v1672 = vpop.f32.mrf.mxu0
        %v1673 = vadd.f32 %v1601, %v1672
        %v1674 = vpop.f32.mrf.mxu0
        %1675 = vdwg.mxu0
        %v1676 = vmax.f32 %v1673, 0.0
        %v1677 = vld [vmem:[%s615] sm:$0xff]
        %v1678 = vld [vmem:[%s615 + $0x8] sm:$0xff]
        %v1679 = vld [vmem:[%s615 + $0x10] sm:$0xff]
        %v1680 = vld [vmem:[%s615 + $0x18] sm:$0xff]
        %v1681 = vld [vmem:[%s615 + $0x20] sm:$0xff]
        %v1682 = vld [vmem:[%s615 + $0x28] sm:$0xff]
        %v1683 = vld [vmem:[%s615 + $0x30] sm:$0xff]
        %v1684 = vld [vmem:[%s615 + $0x38] sm:$0xff]
        %v1685 = vld [vmem:[%s615 + $0x40] sm:$0xff]
        %v1686 = vld [vmem:[%s615 + $0x48] sm:$0xff]
        %v1687 = vld [vmem:[%s615 + $0x50] sm:$0xff]
        %v1688 = vld [vmem:[%s615 + $0x58] sm:$0xff]
        %v1689 = vld [vmem:[%s615 + $0x60] sm:$0xff]
        %v1690 = vld [vmem:[%s615 + $0x68] sm:$0xff]
        %v1691 = vld [vmem:[%s615 + $0x70] sm:$0xff]
        %v1692 = vld [vmem:[%s615 + $0x78] sm:$0xff]
        %v1693 = vld [vmem:[%s712] sm:$0x1]
        %v1695 = vlaneseq
        %v1696 = vshrl.u32 %v1695, 7
        %v1697 = vsub.s32 0, %v1696
        %v1698 = vrot.slane %v1693, %v1697
        %1700 = vmatprep.subr.mxu0 0.0
        %1701 = vmatpush1.msra.mxu0 %v1692
        %1702 = vmatprep.subr.mxu0 0.0
        %1703 = vmatpush1.msra.mxu0 %v1691
        %1704 = vmatprep.subr.mxu0 0.0
        %1705 = vmatpush1.msra.mxu0 %v1690
        %1706 = vmatprep.subr.mxu0 0.0
        %1707 = vmatpush1.msra.mxu0 %v1689
        %1708 = vmatprep.subr.mxu0 0.0
        %1709 = vmatpush1.msra.mxu0 %v1688
        %1710 = vmatprep.subr.mxu0 0.0
        %1711 = vmatpush1.msra.mxu0 %v1687
        %1712 = vmatprep.subr.mxu0 0.0
        %1713 = vmatpush1.msra.mxu0 %v1686
        %1714 = vmatprep.subr.mxu0 0.0
        %1715 = vmatpush1.msra.mxu0 %v1685
        %1716 = vmatprep.subr.mxu0 0.0
        %1717 = vmatpush1.msra.mxu0 %v1684
        %1718 = vmatprep.subr.mxu0 0.0
        %1719 = vmatpush1.msra.mxu0 %v1683
        %1720 = vmatprep.subr.mxu0 0.0
        %1721 = vmatpush1.msra.mxu0 %v1682
        %1722 = vmatprep.subr.mxu0 0.0
        %1723 = vmatpush1.msra.mxu0 %v1681
        %1724 = vmatprep.subr.mxu0 0.0
        %1725 = vmatpush1.msra.mxu0 %v1680
        %1726 = vmatprep.subr.mxu0 0.0
        %1727 = vmatpush1.msra.mxu0 %v1679
        %1728 = vmatprep.subr.mxu0 0.0
        %1729 = vmatpush1.msra.mxu0 %v1678
        %1730 = vmatprep.subr.mxu0 0.0
        %1731 = vmatpush1.msra.mxu0 %v1677
        %1732 = vmatprep.subr.mxu0 0.0
        %1733 = vmatpush2.msra.mxu0 0.0
        %1734 = vmatprep.subr.mxu0 0.0
        %1735 = vmatpush2.msra.mxu0 0.0
        %1736 = vmatprep.subr.mxu0 0.0
        %1737 = vmatpush2.msra.mxu0 0.0
        %1738 = vmatprep.subr.mxu0 0.0
        %1739 = vmatpush2.msra.mxu0 0.0
        %1740 = vmatprep.subr.mxu0 0.0
        %1741 = vmatpush2.msra.mxu0 0.0
        %1742 = vmatprep.subr.mxu0 0.0
        %1743 = vmatpush2.msra.mxu0 0.0
        %1744 = vmatprep.subr.mxu0 0.0
        %1745 = vmatpush2.msra.mxu0 0.0
        %1746 = vmatprep.subr.mxu0 0.0
        %1747 = vmatpush2.msra.mxu0 0.0
        %1748 = vmatprep.subr.mxu0 0.0
        %1749 = vmatpush2.msra.mxu0 0.0
        %1750 = vmatprep.subr.mxu0 0.0
        %1751 = vmatpush2.msra.mxu0 0.0
        %1752 = vmatprep.subr.mxu0 0.0
        %1753 = vmatpush2.msra.mxu0 0.0
        %1754 = vmatprep.subr.mxu0 0.0
        %1755 = vmatpush2.msra.mxu0 0.0
        %1756 = vmatprep.subr.mxu0 0.0
        %1757 = vmatpush2.msra.mxu0 0.0
        %1758 = vmatprep.subr.mxu0 0.0
        %1759 = vmatpush2.msra.mxu0 0.0
        %1760 = vmatprep.subr.mxu0 0.0
        %1761 = vmatpush2.msra.mxu0 0.0
        %1762 = vmatprep.subr.mxu0 0.0
        %1763 = vmatpush2.msra.mxu0 0.0
        %1764 = vmatprep.mubr.f32.mxu0 0.0
        %1765 = vmatmul.mubr.f32.gmra.mxu0 %v1676
        %v1766 = vpop.f32.mrf.mxu0
        %v1767 = vadd.f32 %v1698, %v1766
        %v1768 = vpop.f32.mrf.mxu0
        %1769 = vdwg.mxu0
        %v1770 = vadd.f32 %v1767, %v1591
        %v1771 = vld [vmem:[%s715] sm:$0x1]
        %v1772 = vld [vmem:[%s718] sm:$0x1]
        %v1773 = vsel %vm744, %v1770, 0.0
        %1774 = vadd.xlane.f32.xlu0 %v1773
        %v1775 = vpop.xlane.xlu0 %1774
        %v1776 = vmul.f32 %v1775, %v1567
        %v1777 = vsub.f32 %v1770, %v1776
        %v1778 = vmul.f32 %v1777, %v1777
        %v1779 = vsel %vm744, %v1778, 0.0
        %1780 = vadd.xlane.f32.xlu0 %v1779
        %v1781 = vpop.xlane.xlu0 %1780
        %v1782 = vmul.f32 %v1781, %v1567
        %v1783 = vadd.f32 %v1782, 1e-05
        %v1784 = vrsqrt.pop %v1783
        %v1785 = vmul.f32 %v1777, %v1784
        %v1787 = vlaneseq
        %v1788 = vshrl.u32 %v1787, 7
        %v1789 = vsub.s32 0, %v1788
        %v1790 = vrot.slane %v1771, %v1789
        %v1792 = vmul.f32 %v1785, %v1790
        %v1794 = vlaneseq
        %v1795 = vshrl.u32 %v1794, 7
        %v1796 = vsub.s32 0, %v1795
        %v1797 = vrot.slane %v1772, %v1796
        %v1799 = vadd.f32 %v1792, %v1797
        %1800 = vst.msk [vmem:[#allocation2] sm:$0xff] %vm744, %v1799
        %p1801 = scmp.eq.s32.totalorder %s39, 1
        // Predicated region
        $region101: #{rtransformer_forward.1} parent=75 // pred_check
          %p1802 = pneg %p1801
        $region102: #{rtransformer_forward.1} parent=75 // pred_check_branch
          %1804 = sbr.rel (%p1802) target = $region104
        $region103: #{rtransformer_forward.1} parent=75 // pred_region
          %v1805 = vsel %vm744, %v1799, -inf
          %v1806 = vrot.slane %v1805, 4
          %v1807 = vmax.f32 %v1805, %v1806
          %v1808 = vrot.slane %v1807, 2
          %v1809 = vmax.f32 %v1807, %v1808
          %v1810 = vrot.slane %v1809, 1
          %v1811 = vmax.f32 %v1809, %v1810
          %v1812 = vld [vmem:[#allocation10] sm:$0xff]
          %v1813 = vld [vmem:[#allocation10 + $0x8] sm:$0xff]
          %v1814 = vld [vmem:[#allocation10 + $0x10] sm:$0xff]
          %v1815 = vld [vmem:[#allocation10 + $0x18] sm:$0xff]
          %v1816 = vld [vmem:[%s13] sm:$0x1]
          %v1818 = vsel %vm744, %v1811, 0
          %1820 = vmatprep.subr.mxu0 0.0
          %1821 = vmatpush1.msra.mxu0 0.0
          %1822 = vmatprep.subr.mxu0 0.0
          %1823 = vmatpush1.msra.mxu0 0.0
          %1824 = vmatprep.subr.mxu0 0.0
          %1825 = vmatpush1.msra.mxu0 0.0
          %1826 = vmatprep.subr.mxu0 0.0
          %1827 = vmatpush1.msra.mxu0 0.0
          %1828 = vmatprep.subr.mxu0 0.0
          %1829 = vmatpush1.msra.mxu0 0.0
          %1830 = vmatprep.subr.mxu0 0.0
          %1831 = vmatpush1.msra.mxu0 0.0
          %1832 = vmatprep.subr.mxu0 0.0
          %1833 = vmatpush1.msra.mxu0 0.0
          %1834 = vmatprep.subr.mxu0 0.0
          %1835 = vmatpush1.msra.mxu0 0.0
          %1836 = vmatprep.subr.mxu0 0.0
          %1837 = vmatpush1.msra.mxu0 0.0
          %1838 = vmatprep.subr.mxu0 0.0
          %1839 = vmatpush1.msra.mxu0 0.0
          %1840 = vmatprep.subr.mxu0 0.0
          %1841 = vmatpush1.msra.mxu0 0.0
          %1842 = vmatprep.subr.mxu0 0.0
          %1843 = vmatpush1.msra.mxu0 0.0
          %1844 = vmatprep.subr.mxu0 0.0
          %1845 = vmatpush1.msra.mxu0 %v1815
          %1846 = vmatprep.subr.mxu0 0.0
          %1847 = vmatpush1.msra.mxu0 %v1814
          %1848 = vmatprep.subr.mxu0 0.0
          %1849 = vmatpush1.msra.mxu0 %v1813
          %1850 = vmatprep.subr.mxu0 0.0
          %1851 = vmatpush1.msra.mxu0 %v1812
          %1852 = vmatprep.subr.mxu0 0.0
          %1853 = vmatpush2.msra.mxu0 0.0
          %1854 = vmatprep.subr.mxu0 0.0
          %1855 = vmatpush2.msra.mxu0 0.0
          %1856 = vmatprep.subr.mxu0 0.0
          %1857 = vmatpush2.msra.mxu0 0.0
          %1858 = vmatprep.subr.mxu0 0.0
          %1859 = vmatpush2.msra.mxu0 0.0
          %1860 = vmatprep.subr.mxu0 0.0
          %1861 = vmatpush2.msra.mxu0 0.0
          %1862 = vmatprep.subr.mxu0 0.0
          %1863 = vmatpush2.msra.mxu0 0.0
          %1864 = vmatprep.subr.mxu0 0.0
          %1865 = vmatpush2.msra.mxu0 0.0
          %1866 = vmatprep.subr.mxu0 0.0
          %1867 = vmatpush2.msra.mxu0 0.0
          %1868 = vmatprep.subr.mxu0 0.0
          %1869 = vmatpush2.msra.mxu0 0.0
          %1870 = vmatprep.subr.mxu0 0.0
          %1871 = vmatpush2.msra.mxu0 0.0
          %1872 = vmatprep.subr.mxu0 0.0
          %1873 = vmatpush2.msra.mxu0 0.0
          %1874 = vmatprep.subr.mxu0 0.0
          %1875 = vmatpush2.msra.mxu0 0.0
          %1876 = vmatprep.subr.mxu0 0.0
          %1877 = vmatpush2.msra.mxu0 0.0
          %1878 = vmatprep.subr.mxu0 0.0
          %1879 = vmatpush2.msra.mxu0 0.0
          %1880 = vmatprep.subr.mxu0 0.0
          %1881 = vmatpush2.msra.mxu0 0.0
          %1882 = vmatprep.subr.mxu0 0.0
          %1883 = vmatpush2.msra.mxu0 0.0
          %1884 = vmatprep.mubr.f32.mxu0 0.0
          %1885 = vmatmul.mubr.f32.gmra.mxu0 %v1818
          %v1886 = vpop.f32.mrf.mxu0
          %v1887 = vadd.f32 %v1816, %v1886
          %v1888 = vpop.f32.mrf.mxu0
          %1889 = vdwg.mxu0
          %vm1890 = vcmask 8192
          %1891 = vst.msk [vmem:[%s721] sm:$0x1] %vm1890, %v1887
        $region104: #{rtransformer_forward.1} parent=75 // pred_fallthru
          _
        %p1892 = scmp.lt.s32.totalorder %s38, 1
        %s1893 = scalar_select %p1892, %s38, 1
        %s1894 = scalar_lea.vmem %s14, %s1893
        // Predicated region
        $region105: #{rtransformer_forward.1} parent=75 // pred_check
          %p1895 = pneg %p413
        $region106: #{rtransformer_forward.1} parent=75 // pred_check_branch
          %1897 = sbr.rel (%p1895) target = $region108
        $region107: #{rtransformer_forward.1} parent=75 // pred_region
          _
        $region108: #{rtransformer_forward.1} parent=75 // pred_fallthru
          _
      $region76: #{rtransformer_forward.1} parent=5 // pred_fallthru
        _
      %p1898 = scmp.le.s32.totalorder 2, %s29
      // Predicated region
      $region109: #{rtransformer_forward.1} parent=5 // pred_check
        %p1899 = pneg %p1898
      $region110: #{rtransformer_forward.1} parent=5 // pred_check_branch
        %1901 = sbr.rel (%p1899) target = $region112
      $region111: #{rtransformer_forward.1} parent=5 // pred_region
        %s1902 = ssub.s32 %s29, 2
        // Predicated region
        $region113: #{rtransformer_forward.1} parent=111 // pred_check
          %p1903 = pneg %p419
        $region114: #{rtransformer_forward.1} parent=111 // pred_check_branch
          %1905 = sbr.rel (%p1903) target = $region116
        $region115: #{rtransformer_forward.1} parent=111 // pred_region
          %p1906 = scmp.lt.s32.totalorder %s40, 1
          %s1907 = scalar_select %p1906, %s40, 1
          %s1908 = scalar_lea.vmem %s14, %s1907
        $region116: #{rtransformer_forward.1} parent=111 // pred_fallthru
          _
      $region112: #{rtransformer_forward.1} parent=5 // pred_fallthru
        _
    $region6: #{rtransformer_forward.1} parent=1 // loop_footer
      %s33 = sadd.s32 1, %s29
    $region7: #{rtransformer_forward.1} parent=1 // loop_footer_branch
      %28 = sbr.rel target = $region3
    $region8: #{rtransformer_forward.1} parent=1 // loop_exit
      _
    %1909 = vsyncpa [#allocation4], 1
    %s1910 = scalar_lea.sflag [#allocation4], 1
    %1911 = vsyncpa %s1910, 1
    %1912 = vsyncpa [#allocation6], 1
    %s1913 = scalar_lea.sflag [#allocation6], 1
    %1914 = vsyncpa %s1913, 1
    %1915 = vsyncpa [#allocation9], 1
    %s1916 = scalar_lea.sflag [#allocation9], 1
    %1917 = vsyncpa %s1916, 1

</llo_original>
